<compile_context>
chip_gen: v5e
topology: v5e:2x2
jax: 0.10.0
libtpu: 0.0.40
codegen_flags: <defaults>
</compile_context>

<pallas_src>
import functools

import jax
import jax.numpy as jnp
from jax import lax
from jax.experimental import pallas as pl
from jax.experimental.pallas import tpu as pltpu


# ----------------------------- Pallas kernel -------------------------------

def lstm_qnet_kernel(x_ref,                 # (T*Bp, I) time-major, flattened
                     wih0_ref, b0_ref,      # (I, 4H), (1, 4H)   [i/f/o cols pre-scaled 0.5]
                     wblk_ref, b1_ref,      # (2H, 8H) block RHS, (1, 4H)
                     w1_ref, bf1_ref,       # (H, 128), (1, 128) [LN affine folded in]
                     w2_ref, bf2_ref,       # (128, out), (1, out)
                     out_ref,               # (Bp, out)
                     xg0_ref,               # VMEM scratch (T, Bp, 4H)
                     hpack_ref,             # VMEM scratch (Bp, 2H) = [h0 | h1]
                     *, T, B, H):
    fourH = 4 * H

    # --- Hoisted layer-0 input projection: one well-filled matmul, completely
    # off the serial dependency chain (bias b_ih0+b_hh0 folded in). ---
    xg0 = (jnp.dot(x_ref[...], wih0_ref[...],
                   preferred_element_type=jnp.float32) + b0_ref[...])  # (T*Bp, 4H)
    # Store per-step tiles into the (T, Bp, 4H) scratch (Bp-aligned slices).
    for t in range(T):
        xg0_ref[t] = xg0[t * B:(t + 1) * B, :]

    wblk = wblk_ref[...]                                       # (2H, 8H)
    # Hoisted bias broadcast for layer 1 (JAX does not CSE broadcast_in_dim).
    b1b = jnp.broadcast_to(b1_ref[...], (B, fourH))

    def cell(gates, c):
        # i/f/o columns of the weights were pre-scaled by 0.5 in the wrapper,
        # so sigmoid(x) == 0.5*tanh(x/2)+0.5 needs only ONE tanh EUP pass over
        # the full gates tile (plus the tanh(c_new) pass below) per cell.
        tg = jnp.tanh(gates)
        i = 0.5 * tg[:, 0 * H:1 * H] + 0.5
        f = 0.5 * tg[:, 1 * H:2 * H] + 0.5
        g = tg[:, 2 * H:3 * H]
        o = 0.5 * tg[:, 3 * H:4 * H] + 0.5
        c_new = f * c + i * g
        h_new = o * jnp.tanh(c_new)
        return h_new, c_new

    zeros_h = jnp.zeros((B, H), jnp.float32)
    c0, c1, h1 = zeros_h, zeros_h, zeros_h
    rec0 = jnp.zeros((B, fourH), jnp.float32)    # h0(-1) @ Whh0 == 0
    hpack_ref[...] = jnp.zeros((B, 2 * H), jnp.float32)

    # Fully unrolled recurrence (T is a small Python int); the LLO scheduler
    # overlaps the off-chain layer-1 cell of step t with layer-0 of step t+1.
    for t in range(T):
        # Layer-0 cell: recurrent contribution rec0 came from the previous
        # step's fused block matmul.
        g0 = xg0_ref[t] + rec0
        h0, c0 = cell(g0, c0)

        # Fused push: [h0(t), h1(t-1)] @ wblk
        #   P[:, :4H] = h0(t) @ Whh0   -> layer-0 recurrent gates for step t+1
        #   P[:, 4H:] = layer-1 gates (pre-bias) for step t
        hpack_ref[:, 0:H] = h0
        P = jnp.dot(hpack_ref[...], wblk, preferred_element_type=jnp.float32)
        rec0 = P[:, 0:fourH]

        # TODO(synk): inter-layer dropout is inactive in eval mode; not modeled.
        g1 = P[:, fourH:2 * fourH] + b1b
        h1, c1 = cell(g1, c1)
        hpack_ref[:, H:2 * H] = h1               # becomes h1(t-1) next step

    # --- LayerNorm (eps = 1e-5); affine (ln_w, ln_b) is folded into fc1. ---
    last = h1
    mean = jnp.mean(last, axis=-1, keepdims=True)
    var = jnp.mean((last - mean) ** 2, axis=-1, keepdims=True)
    z = (last - mean) * lax.rsqrt(var + 1e-5)

    # fc1(+ReLU) with LN affine folded, then fc2.
    hfc = jnp.maximum(
        jnp.dot(z, w1_ref[...], preferred_element_type=jnp.float32)
        + bf1_ref[...], 0.0)
    out_ref[...] = (jnp.dot(hfc, w2_ref[...], preferred_element_type=jnp.float32)
                    + bf2_ref[...])


# ------------------------------ JAX wrapper ---------------------------------

def lstm_qnet_forward(x, params):
    """x: (B, T, I) float32 (batch_first, like PyTorch). Also accepts (B, I)."""
    if x.ndim == 2:
        x = x[:, None, :]
    B, T, I = x.shape
    H = params["w_hh_l0"].shape[1]
    out_size = params["fc2_w"].shape[0]

    # Pad batch up to a full sublane tile so every per-step tile is 8-aligned
    # (padded rows compute garbage that is sliced off at the end).
    Bp = max(8, -(-B // 8) * 8)
    if Bp != B:
        x = jnp.concatenate([x, jnp.zeros((Bp - B, T, I), x.dtype)], axis=0)

    # Time-major, flattened to (T*Bp, I) so layer-0 input GEMM is one matmul.
    x_flat = jnp.transpose(x, (1, 0, 2)).reshape(T * Bp, I).astype(jnp.float32)

    # Pre-scale the i/f/o gate bands by 0.5 so the kernel can use the exact
    # identity sigmoid(x) = 0.5*tanh(x/2) + 0.5 (one tanh EUP pass per gates
    # tile instead of sigmoid + tanh).
    s_ifo = jnp.concatenate([jnp.full((H,), 0.5), jnp.full((H,), 0.5),
                             jnp.ones((H,)), jnp.full((H,), 0.5)]
                            ).astype(jnp.float32)

    def scale_ifo(m):
        return (m * s_ifo).astype(jnp.float32)

    wih0 = scale_ifo(params["w_ih_l0"].T)                        # (I, 4H)
    whh0 = scale_ifo(params["w_hh_l0"].T)                        # (H, 4H)
    b0 = scale_ifo(params["b_ih_l0"] + params["b_hh_l0"])[None, :]
    wih1 = scale_ifo(params["w_ih_l1"].T)                        # (H, 4H)
    whh1 = scale_ifo(params["w_hh_l1"].T)                        # (H, 4H)
    b1 = scale_ifo(params["b_ih_l1"] + params["b_hh_l1"])[None, :]

    # Block RHS for the fused per-step push:
    #   [h0(t), h1(t-1)] @ wblk -> cols [0:4H]  = h0 @ Whh0   (step t+1 layer-0)
    #                              cols [4H:8H] = layer-1 gates (step t)
    wblk = jnp.concatenate(
        [jnp.concatenate([whh0, wih1], axis=1),
         jnp.concatenate([jnp.zeros((H, 4 * H), jnp.float32), whh1], axis=1)],
        axis=0)                                                  # (2H, 8H)

    # Fold the LayerNorm affine into fc1:
    #   (z*ln_w + ln_b) @ fc1_w.T + fc1_b
    #     = z @ (ln_w[:,None]*fc1_w.T) + (ln_b @ fc1_w.T + fc1_b)
    w1_eff = (params["fc1_w"] * params["ln_w"][None, :]).T       # (H, 128)
    bf1_eff = (params["ln_b"] @ params["fc1_w"].T
               + params["fc1_b"])[None, :]                       # (1, 128)
    w2 = params["fc2_w"].T                                       # (128, out)
    bf2 = params["fc2_b"][None, :]                               # (1, out)

    args = (x_flat, wih0, b0, wblk, b1, w1_eff, bf1_eff, w2, bf2)
    vmem = pl.BlockSpec(memory_space=pltpu.MemorySpace.VMEM)
    kernel = functools.partial(lstm_qnet_kernel, T=T, B=Bp, H=H)

    out = pl.pallas_call(
        kernel,
        out_shape=jax.ShapeDtypeStruct((Bp, out_size), jnp.float32),
        in_specs=[vmem] * len(args),
        out_specs=vmem,
        scratch_shapes=[pltpu.VMEM((T, Bp, 4 * H), jnp.float32),   # hoisted xg0
                        pltpu.VMEM((Bp, 2 * H), jnp.float32)],     # packed [h0|h1]
        # Safe on v5e/v6e/v7x; keeps the single-shot xg0 hoist viable at larger
        # T*B on v5e (16 MiB scoped default) without exceeding v7x's 64 MiB.
        compiler_params=pltpu.CompilerParams(
            vmem_limit_bytes=32 * 1024 * 1024),
    )(*args)
    return out[:B]


# --------------------------- pure-JAX reference -----------------------------

def lstm_qnet_reference(x, params):
    if x.ndim == 2:
        x = x[:, None, :]
    B, T, _ = x.shape
    H = params["w_hh_l0"].shape[1]

    def cell(x_t, h, c, wih, whh, bih, bhh):
        gates = x_t @ wih.T + bih + h @ whh.T + bhh
        i, f, g, o = jnp.split(gates, 4, axis=-1)
        i, f, o = jax.nn.sigmoid(i), jax.nn.sigmoid(f), jax.nn.sigmoid(o)
        g = jnp.tanh(g)
        c_new = f * c + i * g
        return o * jnp.tanh(c_new), c_new

    h0 = c0 = h1 = c1 = jnp.zeros((B, H), jnp.float32)
    for t in range(T):
        h0, c0 = cell(x[:, t, :], h0, c0, params["w_ih_l0"], params["w_hh_l0"],
                      params["b_ih_l0"], params["b_hh_l0"])
        h1, c1 = cell(h0, h1, c1, params["w_ih_l1"], params["w_hh_l1"],
                      params["b_ih_l1"], params["b_hh_l1"])

    last = h1
    mean = jnp.mean(last, axis=-1, keepdims=True)
    var = jnp.mean((last - mean) ** 2, axis=-1, keepdims=True)
    normed = (last - mean) / jnp.sqrt(var + 1e-5) * params["ln_w"] + params["ln_b"]
    hfc = jnp.maximum(normed @ params["fc1_w"].T + params["fc1_b"], 0.0)
    return hfc @ params["fc2_w"].T + params["fc2_b"]


# ------------------------------ param init ----------------------------------

def init_params(key, input_size, hidden_size, output_size):
    H = hidden_size
    k_lstm = 1.0 / jnp.sqrt(H)
    k_fc1 = 1.0 / jnp.sqrt(H)
    k_fc2 = 1.0 / jnp.sqrt(128.0)
    keys = jax.random.split(key, 12)

    def u(k, shape, bound):
        return jax.random.uniform(k, shape, jnp.float32, -bound, bound)

    return {
        "w_ih_l0": u(keys[0], (4 * H, input_size), k_lstm),
        "w_hh_l0": u(keys[1], (4 * H, H), k_lstm),
        "b_ih_l0": u(keys[2], (4 * H,), k_lstm),
        "b_hh_l0": u(keys[3], (4 * H,), k_lstm),
        "w_ih_l1": u(keys[4], (4 * H, H), k_lstm),
        "w_hh_l1": u(keys[5], (4 * H, H), k_lstm),
        "b_ih_l1": u(keys[6], (4 * H,), k_lstm),
        "b_hh_l1": u(keys[7], (4 * H,), k_lstm),
        "ln_w": jnp.ones((H,), jnp.float32),
        "ln_b": jnp.zeros((H,), jnp.float32),
        "fc1_w": u(keys[8], (128, H), k_fc1),
        "fc1_b": u(keys[9], (128,), k_fc1),
        "fc2_w": u(keys[10], (output_size, 128), k_fc2),
        "fc2_b": u(keys[11], (output_size,), k_fc2),
    }


# --------------------------------- main --------------------------------------

if __name__ == "__main__":
    B, T, I, H, OUT = 2, 8, 16, 32, 4

    key = jax.random.PRNGKey(0)
    kx, kp = jax.random.split(key)
    x = jax.random.normal(kx, (B, T, I), jnp.float32)
    params = init_params(kp, I, H, OUT)

    out = jax.block_until_ready(lstm_qnet_forward(x, params))
    ref = jax.block_until_ready(lstm_qnet_reference(x, params))

    assert out.shape == (B, OUT), out.shape
    assert jnp.allclose(out, ref, rtol=1e-4, atol=1e-4), (
        f"mismatch: max abs err {jnp.max(jnp.abs(out - ref))}")
    print("KERNEL_OK")
</pallas_src>

<mosaic_0001>
module attributes {stable_mosaic.version = 11 : i64} {
  func.func @lstm_qnet_kernel(%arg0: memref<64x16xf32, #tpu.memory_space<vmem>>, %arg1: memref<16x128xf32, #tpu.memory_space<vmem>>, %arg2: memref<1x128xf32, #tpu.memory_space<vmem>>, %arg3: memref<64x256xf32, #tpu.memory_space<vmem>>, %arg4: memref<1x128xf32, #tpu.memory_space<vmem>>, %arg5: memref<32x128xf32, #tpu.memory_space<vmem>>, %arg6: memref<1x128xf32, #tpu.memory_space<vmem>>, %arg7: memref<128x4xf32, #tpu.memory_space<vmem>>, %arg8: memref<1x4xf32, #tpu.memory_space<vmem>>, %arg9: memref<8x4xf32, #tpu.memory_space<vmem>>, %arg10: memref<8x8x128xf32, #tpu.memory_space<vmem>>, %arg11: memref<8x64xf32, #tpu.memory_space<vmem>>) attributes {dimension_semantics = [], scalar_prefetch = 0 : i64, scratch_operands = 2 : i64, tpu.core_type = #tpu.core_type<tc>} {
    %c0 = arith.constant 0 : index
    %c0_0 = arith.constant 0 : index
    %0 = vector.load %arg0[%c0, %c0_0] : memref<64x16xf32, #tpu.memory_space<vmem>>, vector<64x16xf32>
    %c0_1 = arith.constant 0 : index
    %c0_2 = arith.constant 0 : index
    %1 = vector.load %arg1[%c0_1, %c0_2] : memref<16x128xf32, #tpu.memory_space<vmem>>, vector<16x128xf32>
    %cst = arith.constant dense<0.000000e+00> : vector<64x128xf32>
    %2 = tpu.matmul %0, %1, %cst {dimension_numbers = #tpu.dot_dimension_numbers<[1], [0], [0], [1], [0, 0, 1, 1], [], []>} : vector<64x16xf32>, vector<16x128xf32>, vector<64x128xf32> -> vector<64x128xf32>
    %c0_3 = arith.constant 0 : index
    %c0_4 = arith.constant 0 : index
    %3 = vector.load %arg2[%c0_3, %c0_4] : memref<1x128xf32, #tpu.memory_space<vmem>>, vector<1x128xf32>
    %4 = vector.broadcast %3 : vector<1x128xf32> to vector<64x128xf32>
    %5 = arith.addf %2, %4 : vector<64x128xf32>
    %6 = vector.extract_strided_slice %5 {offsets = [0, 0], sizes = [8, 128], strides = [1, 1]} : vector<64x128xf32> to vector<8x128xf32>
    %c0_5 = arith.constant 0 : index
    %c0_6 = arith.constant 0 : index
    %c0_7 = arith.constant 0 : index
    %7 = vector.load %arg10[%c0_5, %c0_6, %c0_7] : memref<8x8x128xf32, #tpu.memory_space<vmem>>, vector<1x8x128xf32>
    %8 = vector.shape_cast %7 : vector<1x8x128xf32> to vector<8x128xf32>
    %9 = vector.shape_cast %6 : vector<8x128xf32> to vector<1x8x128xf32>
    tpu.vector_store %arg10[%c0_5, %c0_6, %c0_7], %9 {strides = array<i32>} : memref<8x8x128xf32, #tpu.memory_space<vmem>>, vector<1x8x128xf32>,
    %10 = vector.extract_strided_slice %5 {offsets = [8, 0], sizes = [8, 128], strides = [1, 1]} : vector<64x128xf32> to vector<8x128xf32>
    %c1 = arith.constant 1 : index
    %c0_8 = arith.constant 0 : index
    %c0_9 = arith.constant 0 : index
    %11 = vector.load %arg10[%c1, %c0_8, %c0_9] : memref<8x8x128xf32, #tpu.memory_space<vmem>>, vector<1x8x128xf32>
    %12 = vector.shape_cast %11 : vector<1x8x128xf32> to vector<8x128xf32>
    %13 = vector.shape_cast %10 : vector<8x128xf32> to vector<1x8x128xf32>
    tpu.vector_store %arg10[%c1, %c0_8, %c0_9], %13 {strides = array<i32>} : memref<8x8x128xf32, #tpu.memory_space<vmem>>, vector<1x8x128xf32>,
    %14 = vector.extract_strided_slice %5 {offsets = [16, 0], sizes = [8, 128], strides = [1, 1]} : vector<64x128xf32> to vector<8x128xf32>
    %c2 = arith.constant 2 : index
    %c0_10 = arith.constant 0 : index
    %c0_11 = arith.constant 0 : index
    %15 = vector.load %arg10[%c2, %c0_10, %c0_11] : memref<8x8x128xf32, #tpu.memory_space<vmem>>, vector<1x8x128xf32>
    %16 = vector.shape_cast %15 : vector<1x8x128xf32> to vector<8x128xf32>
    %17 = vector.shape_cast %14 : vector<8x128xf32> to vector<1x8x128xf32>
    tpu.vector_store %arg10[%c2, %c0_10, %c0_11], %17 {strides = array<i32>} : memref<8x8x128xf32, #tpu.memory_space<vmem>>, vector<1x8x128xf32>,
    %18 = vector.extract_strided_slice %5 {offsets = [24, 0], sizes = [8, 128], strides = [1, 1]} : vector<64x128xf32> to vector<8x128xf32>
    %c3 = arith.constant 3 : index
    %c0_12 = arith.constant 0 : index
    %c0_13 = arith.constant 0 : index
    %19 = vector.load %arg10[%c3, %c0_12, %c0_13] : memref<8x8x128xf32, #tpu.memory_space<vmem>>, vector<1x8x128xf32>
    %20 = vector.shape_cast %19 : vector<1x8x128xf32> to vector<8x128xf32>
    %21 = vector.shape_cast %18 : vector<8x128xf32> to vector<1x8x128xf32>
    tpu.vector_store %arg10[%c3, %c0_12, %c0_13], %21 {strides = array<i32>} : memref<8x8x128xf32, #tpu.memory_space<vmem>>, vector<1x8x128xf32>,
    %22 = vector.extract_strided_slice %5 {offsets = [32, 0], sizes = [8, 128], strides = [1, 1]} : vector<64x128xf32> to vector<8x128xf32>
    %c4 = arith.constant 4 : index
    %c0_14 = arith.constant 0 : index
    %c0_15 = arith.constant 0 : index
    %23 = vector.load %arg10[%c4, %c0_14, %c0_15] : memref<8x8x128xf32, #tpu.memory_space<vmem>>, vector<1x8x128xf32>
    %24 = vector.shape_cast %23 : vector<1x8x128xf32> to vector<8x128xf32>
    %25 = vector.shape_cast %22 : vector<8x128xf32> to vector<1x8x128xf32>
    tpu.vector_store %arg10[%c4, %c0_14, %c0_15], %25 {strides = array<i32>} : memref<8x8x128xf32, #tpu.memory_space<vmem>>, vector<1x8x128xf32>,
    %26 = vector.extract_strided_slice %5 {offsets = [40, 0], sizes = [8, 128], strides = [1, 1]} : vector<64x128xf32> to vector<8x128xf32>
    %c5 = arith.constant 5 : index
    %c0_16 = arith.constant 0 : index
    %c0_17 = arith.constant 0 : index
    %27 = vector.load %arg10[%c5, %c0_16, %c0_17] : memref<8x8x128xf32, #tpu.memory_space<vmem>>, vector<1x8x128xf32>
    %28 = vector.shape_cast %27 : vector<1x8x128xf32> to vector<8x128xf32>
    %29 = vector.shape_cast %26 : vector<8x128xf32> to vector<1x8x128xf32>
    tpu.vector_store %arg10[%c5, %c0_16, %c0_17], %29 {strides = array<i32>} : memref<8x8x128xf32, #tpu.memory_space<vmem>>, vector<1x8x128xf32>,
    %30 = vector.extract_strided_slice %5 {offsets = [48, 0], sizes = [8, 128], strides = [1, 1]} : vector<64x128xf32> to vector<8x128xf32>
    %c6 = arith.constant 6 : index
    %c0_18 = arith.constant 0 : index
    %c0_19 = arith.constant 0 : index
    %31 = vector.load %arg10[%c6, %c0_18, %c0_19] : memref<8x8x128xf32, #tpu.memory_space<vmem>>, vector<1x8x128xf32>
    %32 = vector.shape_cast %31 : vector<1x8x128xf32> to vector<8x128xf32>
    %33 = vector.shape_cast %30 : vector<8x128xf32> to vector<1x8x128xf32>
    tpu.vector_store %arg10[%c6, %c0_18, %c0_19], %33 {strides = array<i32>} : memref<8x8x128xf32, #tpu.memory_space<vmem>>, vector<1x8x128xf32>,
    %34 = vector.extract_strided_slice %5 {offsets = [56, 0], sizes = [8, 128], strides = [1, 1]} : vector<64x128xf32> to vector<8x128xf32>
    %c7 = arith.constant 7 : index
    %c0_20 = arith.constant 0 : index
    %c0_21 = arith.constant 0 : index
    %35 = vector.load %arg10[%c7, %c0_20, %c0_21] : memref<8x8x128xf32, #tpu.memory_space<vmem>>, vector<1x8x128xf32>
    %36 = vector.shape_cast %35 : vector<1x8x128xf32> to vector<8x128xf32>
    %37 = vector.shape_cast %34 : vector<8x128xf32> to vector<1x8x128xf32>
    tpu.vector_store %arg10[%c7, %c0_20, %c0_21], %37 {strides = array<i32>} : memref<8x8x128xf32, #tpu.memory_space<vmem>>, vector<1x8x128xf32>,
    %c0_22 = arith.constant 0 : index
    %c0_23 = arith.constant 0 : index
    %38 = vector.load %arg3[%c0_22, %c0_23] : memref<64x256xf32, #tpu.memory_space<vmem>>, vector<64x256xf32>
    %c0_24 = arith.constant 0 : index
    %c0_25 = arith.constant 0 : index
    %39 = vector.load %arg4[%c0_24, %c0_25] : memref<1x128xf32, #tpu.memory_space<vmem>>, vector<1x128xf32>
    %40 = vector.shape_cast %39 : vector<1x128xf32> to vector<1x128xf32>
    %41 = vector.broadcast %40 : vector<1x128xf32> to vector<8x128xf32>
    %cst_26 = arith.constant 0.000000e+00 : f32
    %42 = vector.broadcast %cst_26 : f32 to vector<8x32xf32>
    %cst_27 = arith.constant 0.000000e+00 : f32
    %43 = vector.broadcast %cst_27 : f32 to vector<8x128xf32>
    %cst_28 = arith.constant 0.000000e+00 : f32
    %44 = vector.broadcast %cst_28 : f32 to vector<8x64xf32>
    %c0_29 = arith.constant 0 : index
    %c0_30 = arith.constant 0 : index
    %45 = vector.load %arg11[%c0_29, %c0_30] : memref<8x64xf32, #tpu.memory_space<vmem>>, vector<8x64xf32>
    tpu.vector_store %arg11[%c0_29, %c0_30], %44 {strides = array<i32>} : memref<8x64xf32, #tpu.memory_space<vmem>>, vector<8x64xf32>,
    %c0_31 = arith.constant 0 : index
    %c0_32 = arith.constant 0 : index
    %c0_33 = arith.constant 0 : index
    %46 = vector.load %arg10[%c0_31, %c0_32, %c0_33] : memref<8x8x128xf32, #tpu.memory_space<vmem>>, vector<1x8x128xf32>
    %47 = vector.shape_cast %46 : vector<1x8x128xf32> to vector<8x128xf32>
    %48 = arith.addf %47, %43 : vector<8x128xf32>
    %49 = math.tanh %48 : vector<8x128xf32>
    %50 = vector.extract_strided_slice %49 {offsets = [0, 0], sizes = [8, 32], strides = [1, 1]} : vector<8x128xf32> to vector<8x32xf32>
    %cst_34 = arith.constant 5.000000e-01 : f32
    %51 = vector.broadcast %cst_34 : f32 to vector<8x32xf32>
    %52 = arith.mulf %51, %50 : vector<8x32xf32>
    %cst_35 = arith.constant 5.000000e-01 : f32
    %53 = vector.broadcast %cst_35 : f32 to vector<8x32xf32>
    %54 = arith.addf %52, %53 : vector<8x32xf32>
    %55 = vector.extract_strided_slice %49 {offsets = [0, 32], sizes = [8, 32], strides = [1, 1]} : vector<8x128xf32> to vector<8x32xf32>
    %cst_36 = arith.constant 5.000000e-01 : f32
    %56 = vector.broadcast %cst_36 : f32 to vector<8x32xf32>
    %57 = arith.mulf %56, %55 : vector<8x32xf32>
    %cst_37 = arith.constant 5.000000e-01 : f32
    %58 = vector.broadcast %cst_37 : f32 to vector<8x32xf32>
    %59 = arith.addf %57, %58 : vector<8x32xf32>
    %60 = vector.extract_strided_slice %49 {offsets = [0, 64], sizes = [8, 32], strides = [1, 1]} : vector<8x128xf32> to vector<8x32xf32>
    %61 = vector.extract_strided_slice %49 {offsets = [0, 96], sizes = [8, 32], strides = [1, 1]} : vector<8x128xf32> to vector<8x32xf32>
    %cst_38 = arith.constant 5.000000e-01 : f32
    %62 = vector.broadcast %cst_38 : f32 to vector<8x32xf32>
    %63 = arith.mulf %62, %61 : vector<8x32xf32>
    %cst_39 = arith.constant 5.000000e-01 : f32
    %64 = vector.broadcast %cst_39 : f32 to vector<8x32xf32>
    %65 = arith.addf %63, %64 : vector<8x32xf32>
    %66 = arith.mulf %59, %42 : vector<8x32xf32>
    %67 = arith.mulf %54, %60 : vector<8x32xf32>
    %68 = arith.addf %66, %67 : vector<8x32xf32>
    %69 = math.tanh %68 : vector<8x32xf32>
    %70 = arith.mulf %65, %69 : vector<8x32xf32>
    %c0_40 = arith.constant 0 : index
    %c0_41 = arith.constant 0 : index
    %71 = vector.load %arg11[%c0_40, %c0_41] : memref<8x64xf32, #tpu.memory_space<vmem>>, vector<8x32xf32>
    tpu.vector_store %arg11[%c0_40, %c0_41], %70 {strides = array<i32>} : memref<8x64xf32, #tpu.memory_space<vmem>>, vector<8x32xf32>,
    %c0_42 = arith.constant 0 : index
    %c0_43 = arith.constant 0 : index
    %72 = vector.load %arg11[%c0_42, %c0_43] : memref<8x64xf32, #tpu.memory_space<vmem>>, vector<8x64xf32>
    %cst_44 = arith.constant dense<0.000000e+00> : vector<8x256xf32>
    %73 = tpu.matmul %72, %38, %cst_44 {dimension_numbers = #tpu.dot_dimension_numbers<[1], [0], [0], [1], [0, 0, 1, 1], [], []>} : vector<8x64xf32>, vector<64x256xf32>, vector<8x256xf32> -> vector<8x256xf32>
    %74 = vector.extract_strided_slice %73 {offsets = [0, 0], sizes = [8, 128], strides = [1, 1]} : vector<8x256xf32> to vector<8x128xf32>
    %75 = vector.extract_strided_slice %73 {offsets = [0, 128], sizes = [8, 128], strides = [1, 1]} : vector<8x256xf32> to vector<8x128xf32>
    %76 = arith.addf %75, %41 : vector<8x128xf32>
    %77 = math.tanh %76 : vector<8x128xf32>
    %78 = vector.extract_strided_slice %77 {offsets = [0, 0], sizes = [8, 32], strides = [1, 1]} : vector<8x128xf32> to vector<8x32xf32>
    %cst_45 = arith.constant 5.000000e-01 : f32
    %79 = vector.broadcast %cst_45 : f32 to vector<8x32xf32>
    %80 = arith.mulf %79, %78 : vector<8x32xf32>
    %cst_46 = arith.constant 5.000000e-01 : f32
    %81 = vector.broadcast %cst_46 : f32 to vector<8x32xf32>
    %82 = arith.addf %80, %81 : vector<8x32xf32>
    %83 = vector.extract_strided_slice %77 {offsets = [0, 32], sizes = [8, 32], strides = [1, 1]} : vector<8x128xf32> to vector<8x32xf32>
    %cst_47 = arith.constant 5.000000e-01 : f32
    %84 = vector.broadcast %cst_47 : f32 to vector<8x32xf32>
    %85 = arith.mulf %84, %83 : vector<8x32xf32>
    %cst_48 = arith.constant 5.000000e-01 : f32
    %86 = vector.broadcast %cst_48 : f32 to vector<8x32xf32>
    %87 = arith.addf %85, %86 : vector<8x32xf32>
    %88 = vector.extract_strided_slice %77 {offsets = [0, 64], sizes = [8, 32], strides = [1, 1]} : vector<8x128xf32> to vector<8x32xf32>
    %89 = vector.extract_strided_slice %77 {offsets = [0, 96], sizes = [8, 32], strides = [1, 1]} : vector<8x128xf32> to vector<8x32xf32>
    %cst_49 = arith.constant 5.000000e-01 : f32
    %90 = vector.broadcast %cst_49 : f32 to vector<8x32xf32>
    %91 = arith.mulf %90, %89 : vector<8x32xf32>
    %cst_50 = arith.constant 5.000000e-01 : f32
    %92 = vector.broadcast %cst_50 : f32 to vector<8x32xf32>
    %93 = arith.addf %91, %92 : vector<8x32xf32>
    %94 = arith.mulf %87, %42 : vector<8x32xf32>
    %95 = arith.mulf %82, %88 : vector<8x32xf32>
    %96 = arith.addf %94, %95 : vector<8x32xf32>
    %97 = math.tanh %96 : vector<8x32xf32>
    %98 = arith.mulf %93, %97 : vector<8x32xf32>
    %c0_51 = arith.constant 0 : index
    %c32 = arith.constant 32 : index
    %99 = vector.load %arg11[%c0_51, %c32] : memref<8x64xf32, #tpu.memory_space<vmem>>, vector<8x32xf32>
    tpu.vector_store %arg11[%c0_51, %c32], %98 {strides = array<i32>} : memref<8x64xf32, #tpu.memory_space<vmem>>, vector<8x32xf32>,
    %c1_52 = arith.constant 1 : index
    %c0_53 = arith.constant 0 : index
    %c0_54 = arith.constant 0 : index
    %100 = vector.load %arg10[%c1_52, %c0_53, %c0_54] : memref<8x8x128xf32, #tpu.memory_space<vmem>>, vector<1x8x128xf32>
    %101 = vector.shape_cast %100 : vector<1x8x128xf32> to vector<8x128xf32>
    %102 = arith.addf %101, %74 : vector<8x128xf32>
    %103 = math.tanh %102 : vector<8x128xf32>
    %104 = vector.extract_strided_slice %103 {offsets = [0, 0], sizes = [8, 32], strides = [1, 1]} : vector<8x128xf32> to vector<8x32xf32>
    %cst_55 = arith.constant 5.000000e-01 : f32
    %105 = vector.broadcast %cst_55 : f32 to vector<8x32xf32>
    %106 = arith.mulf %105, %104 : vector<8x32xf32>
    %cst_56 = arith.constant 5.000000e-01 : f32
    %107 = vector.broadcast %cst_56 : f32 to vector<8x32xf32>
    %108 = arith.addf %106, %107 : vector<8x32xf32>
    %109 = vector.extract_strided_slice %103 {offsets = [0, 32], sizes = [8, 32], strides = [1, 1]} : vector<8x128xf32> to vector<8x32xf32>
    %cst_57 = arith.constant 5.000000e-01 : f32
    %110 = vector.broadcast %cst_57 : f32 to vector<8x32xf32>
    %111 = arith.mulf %110, %109 : vector<8x32xf32>
    %cst_58 = arith.constant 5.000000e-01 : f32
    %112 = vector.broadcast %cst_58 : f32 to vector<8x32xf32>
    %113 = arith.addf %111, %112 : vector<8x32xf32>
    %114 = vector.extract_strided_slice %103 {offsets = [0, 64], sizes = [8, 32], strides = [1, 1]} : vector<8x128xf32> to vector<8x32xf32>
    %115 = vector.extract_strided_slice %103 {offsets = [0, 96], sizes = [8, 32], strides = [1, 1]} : vector<8x128xf32> to vector<8x32xf32>
    %cst_59 = arith.constant 5.000000e-01 : f32
    %116 = vector.broadcast %cst_59 : f32 to vector<8x32xf32>
    %117 = arith.mulf %116, %115 : vector<8x32xf32>
    %cst_60 = arith.constant 5.000000e-01 : f32
    %118 = vector.broadcast %cst_60 : f32 to vector<8x32xf32>
    %119 = arith.addf %117, %118 : vector<8x32xf32>
    %120 = arith.mulf %113, %68 : vector<8x32xf32>
    %121 = arith.mulf %108, %114 : vector<8x32xf32>
    %122 = arith.addf %120, %121 : vector<8x32xf32>
    %123 = math.tanh %122 : vector<8x32xf32>
    %124 = arith.mulf %119, %123 : vector<8x32xf32>
    %c0_61 = arith.constant 0 : index
    %c0_62 = arith.constant 0 : index
    %125 = vector.load %arg11[%c0_61, %c0_62] : memref<8x64xf32, #tpu.memory_space<vmem>>, vector<8x32xf32>
    tpu.vector_store %arg11[%c0_61, %c0_62], %124 {strides = array<i32>} : memref<8x64xf32, #tpu.memory_space<vmem>>, vector<8x32xf32>,
    %c0_63 = arith.constant 0 : index
    %c0_64 = arith.constant 0 : index
    %126 = vector.load %arg11[%c0_63, %c0_64] : memref<8x64xf32, #tpu.memory_space<vmem>>, vector<8x64xf32>
    %cst_65 = arith.constant dense<0.000000e+00> : vector<8x256xf32>
    %127 = tpu.matmul %126, %38, %cst_65 {dimension_numbers = #tpu.dot_dimension_numbers<[1], [0], [0], [1], [0, 0, 1, 1], [], []>} : vector<8x64xf32>, vector<64x256xf32>, vector<8x256xf32> -> vector<8x256xf32>
    %128 = vector.extract_strided_slice %127 {offsets = [0, 0], sizes = [8, 128], strides = [1, 1]} : vector<8x256xf32> to vector<8x128xf32>
    %129 = vector.extract_strided_slice %127 {offsets = [0, 128], sizes = [8, 128], strides = [1, 1]} : vector<8x256xf32> to vector<8x128xf32>
    %130 = arith.addf %129, %41 : vector<8x128xf32>
    %131 = math.tanh %130 : vector<8x128xf32>
    %132 = vector.extract_strided_slice %131 {offsets = [0, 0], sizes = [8, 32], strides = [1, 1]} : vector<8x128xf32> to vector<8x32xf32>
    %cst_66 = arith.constant 5.000000e-01 : f32
    %133 = vector.broadcast %cst_66 : f32 to vector<8x32xf32>
    %134 = arith.mulf %133, %132 : vector<8x32xf32>
    %cst_67 = arith.constant 5.000000e-01 : f32
    %135 = vector.broadcast %cst_67 : f32 to vector<8x32xf32>
    %136 = arith.addf %134, %135 : vector<8x32xf32>
    %137 = vector.extract_strided_slice %131 {offsets = [0, 32], sizes = [8, 32], strides = [1, 1]} : vector<8x128xf32> to vector<8x32xf32>
    %cst_68 = arith.constant 5.000000e-01 : f32
    %138 = vector.broadcast %cst_68 : f32 to vector<8x32xf32>
    %139 = arith.mulf %138, %137 : vector<8x32xf32>
    %cst_69 = arith.constant 5.000000e-01 : f32
    %140 = vector.broadcast %cst_69 : f32 to vector<8x32xf32>
    %141 = arith.addf %139, %140 : vector<8x32xf32>
    %142 = vector.extract_strided_slice %131 {offsets = [0, 64], sizes = [8, 32], strides = [1, 1]} : vector<8x128xf32> to vector<8x32xf32>
    %143 = vector.extract_strided_slice %131 {offsets = [0, 96], sizes = [8, 32], strides = [1, 1]} : vector<8x128xf32> to vector<8x32xf32>
    %cst_70 = arith.constant 5.000000e-01 : f32
    %144 = vector.broadcast %cst_70 : f32 to vector<8x32xf32>
    %145 = arith.mulf %144, %143 : vector<8x32xf32>
    %cst_71 = arith.constant 5.000000e-01 : f32
    %146 = vector.broadcast %cst_71 : f32 to vector<8x32xf32>
    %147 = arith.addf %145, %146 : vector<8x32xf32>
    %148 = arith.mulf %141, %96 : vector<8x32xf32>
    %149 = arith.mulf %136, %142 : vector<8x32xf32>
    %150 = arith.addf %148, %149 : vector<8x32xf32>
    %151 = math.tanh %150 : vector<8x32xf32>
    %152 = arith.mulf %147, %151 : vector<8x32xf32>
    %c0_72 = arith.constant 0 : index
    %c32_73 = arith.constant 32 : index
    %153 = vector.load %arg11[%c0_72, %c32_73] : memref<8x64xf32, #tpu.memory_space<vmem>>, vector<8x32xf32>
    tpu.vector_store %arg11[%c0_72, %c32_73], %152 {strides = array<i32>} : memref<8x64xf32, #tpu.memory_space<vmem>>, vector<8x32xf32>,
    %c2_74 = arith.constant 2 : index
    %c0_75 = arith.constant 0 : index
    %c0_76 = arith.constant 0 : index
    %154 = vector.load %arg10[%c2_74, %c0_75, %c0_76] : memref<8x8x128xf32, #tpu.memory_space<vmem>>, vector<1x8x128xf32>
    %155 = vector.shape_cast %154 : vector<1x8x128xf32> to vector<8x128xf32>
    %156 = arith.addf %155, %128 : vector<8x128xf32>
    %157 = math.tanh %156 : vector<8x128xf32>
    %158 = vector.extract_strided_slice %157 {offsets = [0, 0], sizes = [8, 32], strides = [1, 1]} : vector<8x128xf32> to vector<8x32xf32>
    %cst_77 = arith.constant 5.000000e-01 : f32
    %159 = vector.broadcast %cst_77 : f32 to vector<8x32xf32>
    %160 = arith.mulf %159, %158 : vector<8x32xf32>
    %cst_78 = arith.constant 5.000000e-01 : f32
    %161 = vector.broadcast %cst_78 : f32 to vector<8x32xf32>
    %162 = arith.addf %160, %161 : vector<8x32xf32>
    %163 = vector.extract_strided_slice %157 {offsets = [0, 32], sizes = [8, 32], strides = [1, 1]} : vector<8x128xf32> to vector<8x32xf32>
    %cst_79 = arith.constant 5.000000e-01 : f32
    %164 = vector.broadcast %cst_79 : f32 to vector<8x32xf32>
    %165 = arith.mulf %164, %163 : vector<8x32xf32>
    %cst_80 = arith.constant 5.000000e-01 : f32
    %166 = vector.broadcast %cst_80 : f32 to vector<8x32xf32>
    %167 = arith.addf %165, %166 : vector<8x32xf32>
    %168 = vector.extract_strided_slice %157 {offsets = [0, 64], sizes = [8, 32], strides = [1, 1]} : vector<8x128xf32> to vector<8x32xf32>
    %169 = vector.extract_strided_slice %157 {offsets = [0, 96], sizes = [8, 32], strides = [1, 1]} : vector<8x128xf32> to vector<8x32xf32>
    %cst_81 = arith.constant 5.000000e-01 : f32
    %170 = vector.broadcast %cst_81 : f32 to vector<8x32xf32>
    %171 = arith.mulf %170, %169 : vector<8x32xf32>
    %cst_82 = arith.constant 5.000000e-01 : f32
    %172 = vector.broadcast %cst_82 : f32 to vector<8x32xf32>
    %173 = arith.addf %171, %172 : vector<8x32xf32>
    %174 = arith.mulf %167, %122 : vector<8x32xf32>
    %175 = arith.mulf %162, %168 : vector<8x32xf32>
    %176 = arith.addf %174, %175 : vector<8x32xf32>
    %177 = math.tanh %176 : vector<8x32xf32>
    %178 = arith.mulf %173, %177 : vector<8x32xf32>
    %c0_83 = arith.constant 0 : index
    %c0_84 = arith.constant 0 : index
    %179 = vector.load %arg11[%c0_83, %c0_84] : memref<8x64xf32, #tpu.memory_space<vmem>>, vector<8x32xf32>
    tpu.vector_store %arg11[%c0_83, %c0_84], %178 {strides = array<i32>} : memref<8x64xf32, #tpu.memory_space<vmem>>, vector<8x32xf32>,
    %c0_85 = arith.constant 0 : index
    %c0_86 = arith.constant 0 : index
    %180 = vector.load %arg11[%c0_85, %c0_86] : memref<8x64xf32, #tpu.memory_space<vmem>>, vector<8x64xf32>
    %cst_87 = arith.constant dense<0.000000e+00> : vector<8x256xf32>
    %181 = tpu.matmul %180, %38, %cst_87 {dimension_numbers = #tpu.dot_dimension_numbers<[1], [0], [0], [1], [0, 0, 1, 1], [], []>} : vector<8x64xf32>, vector<64x256xf32>, vector<8x256xf32> -> vector<8x256xf32>
    %182 = vector.extract_strided_slice %181 {offsets = [0, 0], sizes = [8, 128], strides = [1, 1]} : vector<8x256xf32> to vector<8x128xf32>
    %183 = vector.extract_strided_slice %181 {offsets = [0, 128], sizes = [8, 128], strides = [1, 1]} : vector<8x256xf32> to vector<8x128xf32>
    %184 = arith.addf %183, %41 : vector<8x128xf32>
    %185 = math.tanh %184 : vector<8x128xf32>
    %186 = vector.extract_strided_slice %185 {offsets = [0, 0], sizes = [8, 32], strides = [1, 1]} : vector<8x128xf32> to vector<8x32xf32>
    %cst_88 = arith.constant 5.000000e-01 : f32
    %187 = vector.broadcast %cst_88 : f32 to vector<8x32xf32>
    %188 = arith.mulf %187, %186 : vector<8x32xf32>
    %cst_89 = arith.constant 5.000000e-01 : f32
    %189 = vector.broadcast %cst_89 : f32 to vector<8x32xf32>
    %190 = arith.addf %188, %189 : vector<8x32xf32>
    %191 = vector.extract_strided_slice %185 {offsets = [0, 32], sizes = [8, 32], strides = [1, 1]} : vector<8x128xf32> to vector<8x32xf32>
    %cst_90 = arith.constant 5.000000e-01 : f32
    %192 = vector.broadcast %cst_90 : f32 to vector<8x32xf32>
    %193 = arith.mulf %192, %191 : vector<8x32xf32>
    %cst_91 = arith.constant 5.000000e-01 : f32
    %194 = vector.broadcast %cst_91 : f32 to vector<8x32xf32>
    %195 = arith.addf %193, %194 : vector<8x32xf32>
    %196 = vector.extract_strided_slice %185 {offsets = [0, 64], sizes = [8, 32], strides = [1, 1]} : vector<8x128xf32> to vector<8x32xf32>
    %197 = vector.extract_strided_slice %185 {offsets = [0, 96], sizes = [8, 32], strides = [1, 1]} : vector<8x128xf32> to vector<8x32xf32>
    %cst_92 = arith.constant 5.000000e-01 : f32
    %198 = vector.broadcast %cst_92 : f32 to vector<8x32xf32>
    %199 = arith.mulf %198, %197 : vector<8x32xf32>
    %cst_93 = arith.constant 5.000000e-01 : f32
    %200 = vector.broadcast %cst_93 : f32 to vector<8x32xf32>
    %201 = arith.addf %199, %200 : vector<8x32xf32>
    %202 = arith.mulf %195, %150 : vector<8x32xf32>
    %203 = arith.mulf %190, %196 : vector<8x32xf32>
    %204 = arith.addf %202, %203 : vector<8x32xf32>
    %205 = math.tanh %204 : vector<8x32xf32>
    %206 = arith.mulf %201, %205 : vector<8x32xf32>
    %c0_94 = arith.constant 0 : index
    %c32_95 = arith.constant 32 : index
    %207 = vector.load %arg11[%c0_94, %c32_95] : memref<8x64xf32, #tpu.memory_space<vmem>>, vector<8x32xf32>
    tpu.vector_store %arg11[%c0_94, %c32_95], %206 {strides = array<i32>} : memref<8x64xf32, #tpu.memory_space<vmem>>, vector<8x32xf32>,
    %c3_96 = arith.constant 3 : index
    %c0_97 = arith.constant 0 : index
    %c0_98 = arith.constant 0 : index
    %208 = vector.load %arg10[%c3_96, %c0_97, %c0_98] : memref<8x8x128xf32, #tpu.memory_space<vmem>>, vector<1x8x128xf32>
    %209 = vector.shape_cast %208 : vector<1x8x128xf32> to vector<8x128xf32>
    %210 = arith.addf %209, %182 : vector<8x128xf32>
    %211 = math.tanh %210 : vector<8x128xf32>
    %212 = vector.extract_strided_slice %211 {offsets = [0, 0], sizes = [8, 32], strides = [1, 1]} : vector<8x128xf32> to vector<8x32xf32>
    %cst_99 = arith.constant 5.000000e-01 : f32
    %213 = vector.broadcast %cst_99 : f32 to vector<8x32xf32>
    %214 = arith.mulf %213, %212 : vector<8x32xf32>
    %cst_100 = arith.constant 5.000000e-01 : f32
    %215 = vector.broadcast %cst_100 : f32 to vector<8x32xf32>
    %216 = arith.addf %214, %215 : vector<8x32xf32>
    %217 = vector.extract_strided_slice %211 {offsets = [0, 32], sizes = [8, 32], strides = [1, 1]} : vector<8x128xf32> to vector<8x32xf32>
    %cst_101 = arith.constant 5.000000e-01 : f32
    %218 = vector.broadcast %cst_101 : f32 to vector<8x32xf32>
    %219 = arith.mulf %218, %217 : vector<8x32xf32>
    %cst_102 = arith.constant 5.000000e-01 : f32
    %220 = vector.broadcast %cst_102 : f32 to vector<8x32xf32>
    %221 = arith.addf %219, %220 : vector<8x32xf32>
    %222 = vector.extract_strided_slice %211 {offsets = [0, 64], sizes = [8, 32], strides = [1, 1]} : vector<8x128xf32> to vector<8x32xf32>
    %223 = vector.extract_strided_slice %211 {offsets = [0, 96], sizes = [8, 32], strides = [1, 1]} : vector<8x128xf32> to vector<8x32xf32>
    %cst_103 = arith.constant 5.000000e-01 : f32
    %224 = vector.broadcast %cst_103 : f32 to vector<8x32xf32>
    %225 = arith.mulf %224, %223 : vector<8x32xf32>
    %cst_104 = arith.constant 5.000000e-01 : f32
    %226 = vector.broadcast %cst_104 : f32 to vector<8x32xf32>
    %227 = arith.addf %225, %226 : vector<8x32xf32>
    %228 = arith.mulf %221, %176 : vector<8x32xf32>
    %229 = arith.mulf %216, %222 : vector<8x32xf32>
    %230 = arith.addf %228, %229 : vector<8x32xf32>
    %231 = math.tanh %230 : vector<8x32xf32>
    %232 = arith.mulf %227, %231 : vector<8x32xf32>
    %c0_105 = arith.constant 0 : index
    %c0_106 = arith.constant 0 : index
    %233 = vector.load %arg11[%c0_105, %c0_106] : memref<8x64xf32, #tpu.memory_space<vmem>>, vector<8x32xf32>
    tpu.vector_store %arg11[%c0_105, %c0_106], %232 {strides = array<i32>} : memref<8x64xf32, #tpu.memory_space<vmem>>, vector<8x32xf32>,
    %c0_107 = arith.constant 0 : index
    %c0_108 = arith.constant 0 : index
    %234 = vector.load %arg11[%c0_107, %c0_108] : memref<8x64xf32, #tpu.memory_space<vmem>>, vector<8x64xf32>
    %cst_109 = arith.constant dense<0.000000e+00> : vector<8x256xf32>
    %235 = tpu.matmul %234, %38, %cst_109 {dimension_numbers = #tpu.dot_dimension_numbers<[1], [0], [0], [1], [0, 0, 1, 1], [], []>} : vector<8x64xf32>, vector<64x256xf32>, vector<8x256xf32> -> vector<8x256xf32>
    %236 = vector.extract_strided_slice %235 {offsets = [0, 0], sizes = [8, 128], strides = [1, 1]} : vector<8x256xf32> to vector<8x128xf32>
    %237 = vector.extract_strided_slice %235 {offsets = [0, 128], sizes = [8, 128], strides = [1, 1]} : vector<8x256xf32> to vector<8x128xf32>
    %238 = arith.addf %237, %41 : vector<8x128xf32>
    %239 = math.tanh %238 : vector<8x128xf32>
    %240 = vector.extract_strided_slice %239 {offsets = [0, 0], sizes = [8, 32], strides = [1, 1]} : vector<8x128xf32> to vector<8x32xf32>
    %cst_110 = arith.constant 5.000000e-01 : f32
    %241 = vector.broadcast %cst_110 : f32 to vector<8x32xf32>
    %242 = arith.mulf %241, %240 : vector<8x32xf32>
    %cst_111 = arith.constant 5.000000e-01 : f32
    %243 = vector.broadcast %cst_111 : f32 to vector<8x32xf32>
    %244 = arith.addf %242, %243 : vector<8x32xf32>
    %245 = vector.extract_strided_slice %239 {offsets = [0, 32], sizes = [8, 32], strides = [1, 1]} : vector<8x128xf32> to vector<8x32xf32>
    %cst_112 = arith.constant 5.000000e-01 : f32
    %246 = vector.broadcast %cst_112 : f32 to vector<8x32xf32>
    %247 = arith.mulf %246, %245 : vector<8x32xf32>
    %cst_113 = arith.constant 5.000000e-01 : f32
    %248 = vector.broadcast %cst_113 : f32 to vector<8x32xf32>
    %249 = arith.addf %247, %248 : vector<8x32xf32>
    %250 = vector.extract_strided_slice %239 {offsets = [0, 64], sizes = [8, 32], strides = [1, 1]} : vector<8x128xf32> to vector<8x32xf32>
    %251 = vector.extract_strided_slice %239 {offsets = [0, 96], sizes = [8, 32], strides = [1, 1]} : vector<8x128xf32> to vector<8x32xf32>
    %cst_114 = arith.constant 5.000000e-01 : f32
    %252 = vector.broadcast %cst_114 : f32 to vector<8x32xf32>
    %253 = arith.mulf %252, %251 : vector<8x32xf32>
    %cst_115 = arith.constant 5.000000e-01 : f32
    %254 = vector.broadcast %cst_115 : f32 to vector<8x32xf32>
    %255 = arith.addf %253, %254 : vector<8x32xf32>
    %256 = arith.mulf %249, %204 : vector<8x32xf32>
    %257 = arith.mulf %244, %250 : vector<8x32xf32>
    %258 = arith.addf %256, %257 : vector<8x32xf32>
    %259 = math.tanh %258 : vector<8x32xf32>
    %260 = arith.mulf %255, %259 : vector<8x32xf32>
    %c0_116 = arith.constant 0 : index
    %c32_117 = arith.constant 32 : index
    %261 = vector.load %arg11[%c0_116, %c32_117] : memref<8x64xf32, #tpu.memory_space<vmem>>, vector<8x32xf32>
    tpu.vector_store %arg11[%c0_116, %c32_117], %260 {strides = array<i32>} : memref<8x64xf32, #tpu.memory_space<vmem>>, vector<8x32xf32>,
    %c4_118 = arith.constant 4 : index
    %c0_119 = arith.constant 0 : index
    %c0_120 = arith.constant 0 : index
    %262 = vector.load %arg10[%c4_118, %c0_119, %c0_120] : memref<8x8x128xf32, #tpu.memory_space<vmem>>, vector<1x8x128xf32>
    %263 = vector.shape_cast %262 : vector<1x8x128xf32> to vector<8x128xf32>
    %264 = arith.addf %263, %236 : vector<8x128xf32>
    %265 = math.tanh %264 : vector<8x128xf32>
    %266 = vector.extract_strided_slice %265 {offsets = [0, 0], sizes = [8, 32], strides = [1, 1]} : vector<8x128xf32> to vector<8x32xf32>
    %cst_121 = arith.constant 5.000000e-01 : f32
    %267 = vector.broadcast %cst_121 : f32 to vector<8x32xf32>
    %268 = arith.mulf %267, %266 : vector<8x32xf32>
    %cst_122 = arith.constant 5.000000e-01 : f32
    %269 = vector.broadcast %cst_122 : f32 to vector<8x32xf32>
    %270 = arith.addf %268, %269 : vector<8x32xf32>
    %271 = vector.extract_strided_slice %265 {offsets = [0, 32], sizes = [8, 32], strides = [1, 1]} : vector<8x128xf32> to vector<8x32xf32>
    %cst_123 = arith.constant 5.000000e-01 : f32
    %272 = vector.broadcast %cst_123 : f32 to vector<8x32xf32>
    %273 = arith.mulf %272, %271 : vector<8x32xf32>
    %cst_124 = arith.constant 5.000000e-01 : f32
    %274 = vector.broadcast %cst_124 : f32 to vector<8x32xf32>
    %275 = arith.addf %273, %274 : vector<8x32xf32>
    %276 = vector.extract_strided_slice %265 {offsets = [0, 64], sizes = [8, 32], strides = [1, 1]} : vector<8x128xf32> to vector<8x32xf32>
    %277 = vector.extract_strided_slice %265 {offsets = [0, 96], sizes = [8, 32], strides = [1, 1]} : vector<8x128xf32> to vector<8x32xf32>
    %cst_125 = arith.constant 5.000000e-01 : f32
    %278 = vector.broadcast %cst_125 : f32 to vector<8x32xf32>
    %279 = arith.mulf %278, %277 : vector<8x32xf32>
    %cst_126 = arith.constant 5.000000e-01 : f32
    %280 = vector.broadcast %cst_126 : f32 to vector<8x32xf32>
    %281 = arith.addf %279, %280 : vector<8x32xf32>
    %282 = arith.mulf %275, %230 : vector<8x32xf32>
    %283 = arith.mulf %270, %276 : vector<8x32xf32>
    %284 = arith.addf %282, %283 : vector<8x32xf32>
    %285 = math.tanh %284 : vector<8x32xf32>
    %286 = arith.mulf %281, %285 : vector<8x32xf32>
    %c0_127 = arith.constant 0 : index
    %c0_128 = arith.constant 0 : index
    %287 = vector.load %arg11[%c0_127, %c0_128] : memref<8x64xf32, #tpu.memory_space<vmem>>, vector<8x32xf32>
    tpu.vector_store %arg11[%c0_127, %c0_128], %286 {strides = array<i32>} : memref<8x64xf32, #tpu.memory_space<vmem>>, vector<8x32xf32>,
    %c0_129 = arith.constant 0 : index
    %c0_130 = arith.constant 0 : index
    %288 = vector.load %arg11[%c0_129, %c0_130] : memref<8x64xf32, #tpu.memory_space<vmem>>, vector<8x64xf32>
    %cst_131 = arith.constant dense<0.000000e+00> : vector<8x256xf32>
    %289 = tpu.matmul %288, %38, %cst_131 {dimension_numbers = #tpu.dot_dimension_numbers<[1], [0], [0], [1], [0, 0, 1, 1], [], []>} : vector<8x64xf32>, vector<64x256xf32>, vector<8x256xf32> -> vector<8x256xf32>
    %290 = vector.extract_strided_slice %289 {offsets = [0, 0], sizes = [8, 128], strides = [1, 1]} : vector<8x256xf32> to vector<8x128xf32>
    %291 = vector.extract_strided_slice %289 {offsets = [0, 128], sizes = [8, 128], strides = [1, 1]} : vector<8x256xf32> to vector<8x128xf32>
    %292 = arith.addf %291, %41 : vector<8x128xf32>
    %293 = math.tanh %292 : vector<8x128xf32>
    %294 = vector.extract_strided_slice %293 {offsets = [0, 0], sizes = [8, 32], strides = [1, 1]} : vector<8x128xf32> to vector<8x32xf32>
    %cst_132 = arith.constant 5.000000e-01 : f32
    %295 = vector.broadcast %cst_132 : f32 to vector<8x32xf32>
    %296 = arith.mulf %295, %294 : vector<8x32xf32>
    %cst_133 = arith.constant 5.000000e-01 : f32
    %297 = vector.broadcast %cst_133 : f32 to vector<8x32xf32>
    %298 = arith.addf %296, %297 : vector<8x32xf32>
    %299 = vector.extract_strided_slice %293 {offsets = [0, 32], sizes = [8, 32], strides = [1, 1]} : vector<8x128xf32> to vector<8x32xf32>
    %cst_134 = arith.constant 5.000000e-01 : f32
    %300 = vector.broadcast %cst_134 : f32 to vector<8x32xf32>
    %301 = arith.mulf %300, %299 : vector<8x32xf32>
    %cst_135 = arith.constant 5.000000e-01 : f32
    %302 = vector.broadcast %cst_135 : f32 to vector<8x32xf32>
    %303 = arith.addf %301, %302 : vector<8x32xf32>
    %304 = vector.extract_strided_slice %293 {offsets = [0, 64], sizes = [8, 32], strides = [1, 1]} : vector<8x128xf32> to vector<8x32xf32>
    %305 = vector.extract_strided_slice %293 {offsets = [0, 96], sizes = [8, 32], strides = [1, 1]} : vector<8x128xf32> to vector<8x32xf32>
    %cst_136 = arith.constant 5.000000e-01 : f32
    %306 = vector.broadcast %cst_136 : f32 to vector<8x32xf32>
    %307 = arith.mulf %306, %305 : vector<8x32xf32>
    %cst_137 = arith.constant 5.000000e-01 : f32
    %308 = vector.broadcast %cst_137 : f32 to vector<8x32xf32>
    %309 = arith.addf %307, %308 : vector<8x32xf32>
    %310 = arith.mulf %303, %258 : vector<8x32xf32>
    %311 = arith.mulf %298, %304 : vector<8x32xf32>
    %312 = arith.addf %310, %311 : vector<8x32xf32>
    %313 = math.tanh %312 : vector<8x32xf32>
    %314 = arith.mulf %309, %313 : vector<8x32xf32>
    %c0_138 = arith.constant 0 : index
    %c32_139 = arith.constant 32 : index
    %315 = vector.load %arg11[%c0_138, %c32_139] : memref<8x64xf32, #tpu.memory_space<vmem>>, vector<8x32xf32>
    tpu.vector_store %arg11[%c0_138, %c32_139], %314 {strides = array<i32>} : memref<8x64xf32, #tpu.memory_space<vmem>>, vector<8x32xf32>,
    %c5_140 = arith.constant 5 : index
    %c0_141 = arith.constant 0 : index
    %c0_142 = arith.constant 0 : index
    %316 = vector.load %arg10[%c5_140, %c0_141, %c0_142] : memref<8x8x128xf32, #tpu.memory_space<vmem>>, vector<1x8x128xf32>
    %317 = vector.shape_cast %316 : vector<1x8x128xf32> to vector<8x128xf32>
    %318 = arith.addf %317, %290 : vector<8x128xf32>
    %319 = math.tanh %318 : vector<8x128xf32>
    %320 = vector.extract_strided_slice %319 {offsets = [0, 0], sizes = [8, 32], strides = [1, 1]} : vector<8x128xf32> to vector<8x32xf32>
    %cst_143 = arith.constant 5.000000e-01 : f32
    %321 = vector.broadcast %cst_143 : f32 to vector<8x32xf32>
    %322 = arith.mulf %321, %320 : vector<8x32xf32>
    %cst_144 = arith.constant 5.000000e-01 : f32
    %323 = vector.broadcast %cst_144 : f32 to vector<8x32xf32>
    %324 = arith.addf %322, %323 : vector<8x32xf32>
    %325 = vector.extract_strided_slice %319 {offsets = [0, 32], sizes = [8, 32], strides = [1, 1]} : vector<8x128xf32> to vector<8x32xf32>
    %cst_145 = arith.constant 5.000000e-01 : f32
    %326 = vector.broadcast %cst_145 : f32 to vector<8x32xf32>
    %327 = arith.mulf %326, %325 : vector<8x32xf32>
    %cst_146 = arith.constant 5.000000e-01 : f32
    %328 = vector.broadcast %cst_146 : f32 to vector<8x32xf32>
    %329 = arith.addf %327, %328 : vector<8x32xf32>
    %330 = vector.extract_strided_slice %319 {offsets = [0, 64], sizes = [8, 32], strides = [1, 1]} : vector<8x128xf32> to vector<8x32xf32>
    %331 = vector.extract_strided_slice %319 {offsets = [0, 96], sizes = [8, 32], strides = [1, 1]} : vector<8x128xf32> to vector<8x32xf32>
    %cst_147 = arith.constant 5.000000e-01 : f32
    %332 = vector.broadcast %cst_147 : f32 to vector<8x32xf32>
    %333 = arith.mulf %332, %331 : vector<8x32xf32>
    %cst_148 = arith.constant 5.000000e-01 : f32
    %334 = vector.broadcast %cst_148 : f32 to vector<8x32xf32>
    %335 = arith.addf %333, %334 : vector<8x32xf32>
    %336 = arith.mulf %329, %284 : vector<8x32xf32>
    %337 = arith.mulf %324, %330 : vector<8x32xf32>
    %338 = arith.addf %336, %337 : vector<8x32xf32>
    %339 = math.tanh %338 : vector<8x32xf32>
    %340 = arith.mulf %335, %339 : vector<8x32xf32>
    %c0_149 = arith.constant 0 : index
    %c0_150 = arith.constant 0 : index
    %341 = vector.load %arg11[%c0_149, %c0_150] : memref<8x64xf32, #tpu.memory_space<vmem>>, vector<8x32xf32>
    tpu.vector_store %arg11[%c0_149, %c0_150], %340 {strides = array<i32>} : memref<8x64xf32, #tpu.memory_space<vmem>>, vector<8x32xf32>,
    %c0_151 = arith.constant 0 : index
    %c0_152 = arith.constant 0 : index
    %342 = vector.load %arg11[%c0_151, %c0_152] : memref<8x64xf32, #tpu.memory_space<vmem>>, vector<8x64xf32>
    %cst_153 = arith.constant dense<0.000000e+00> : vector<8x256xf32>
    %343 = tpu.matmul %342, %38, %cst_153 {dimension_numbers = #tpu.dot_dimension_numbers<[1], [0], [0], [1], [0, 0, 1, 1], [], []>} : vector<8x64xf32>, vector<64x256xf32>, vector<8x256xf32> -> vector<8x256xf32>
    %344 = vector.extract_strided_slice %343 {offsets = [0, 0], sizes = [8, 128], strides = [1, 1]} : vector<8x256xf32> to vector<8x128xf32>
    %345 = vector.extract_strided_slice %343 {offsets = [0, 128], sizes = [8, 128], strides = [1, 1]} : vector<8x256xf32> to vector<8x128xf32>
    %346 = arith.addf %345, %41 : vector<8x128xf32>
    %347 = math.tanh %346 : vector<8x128xf32>
    %348 = vector.extract_strided_slice %347 {offsets = [0, 0], sizes = [8, 32], strides = [1, 1]} : vector<8x128xf32> to vector<8x32xf32>
    %cst_154 = arith.constant 5.000000e-01 : f32
    %349 = vector.broadcast %cst_154 : f32 to vector<8x32xf32>
    %350 = arith.mulf %349, %348 : vector<8x32xf32>
    %cst_155 = arith.constant 5.000000e-01 : f32
    %351 = vector.broadcast %cst_155 : f32 to vector<8x32xf32>
    %352 = arith.addf %350, %351 : vector<8x32xf32>
    %353 = vector.extract_strided_slice %347 {offsets = [0, 32], sizes = [8, 32], strides = [1, 1]} : vector<8x128xf32> to vector<8x32xf32>
    %cst_156 = arith.constant 5.000000e-01 : f32
    %354 = vector.broadcast %cst_156 : f32 to vector<8x32xf32>
    %355 = arith.mulf %354, %353 : vector<8x32xf32>
    %cst_157 = arith.constant 5.000000e-01 : f32
    %356 = vector.broadcast %cst_157 : f32 to vector<8x32xf32>
    %357 = arith.addf %355, %356 : vector<8x32xf32>
    %358 = vector.extract_strided_slice %347 {offsets = [0, 64], sizes = [8, 32], strides = [1, 1]} : vector<8x128xf32> to vector<8x32xf32>
    %359 = vector.extract_strided_slice %347 {offsets = [0, 96], sizes = [8, 32], strides = [1, 1]} : vector<8x128xf32> to vector<8x32xf32>
    %cst_158 = arith.constant 5.000000e-01 : f32
    %360 = vector.broadcast %cst_158 : f32 to vector<8x32xf32>
    %361 = arith.mulf %360, %359 : vector<8x32xf32>
    %cst_159 = arith.constant 5.000000e-01 : f32
    %362 = vector.broadcast %cst_159 : f32 to vector<8x32xf32>
    %363 = arith.addf %361, %362 : vector<8x32xf32>
    %364 = arith.mulf %357, %312 : vector<8x32xf32>
    %365 = arith.mulf %352, %358 : vector<8x32xf32>
    %366 = arith.addf %364, %365 : vector<8x32xf32>
    %367 = math.tanh %366 : vector<8x32xf32>
    %368 = arith.mulf %363, %367 : vector<8x32xf32>
    %c0_160 = arith.constant 0 : index
    %c32_161 = arith.constant 32 : index
    %369 = vector.load %arg11[%c0_160, %c32_161] : memref<8x64xf32, #tpu.memory_space<vmem>>, vector<8x32xf32>
    tpu.vector_store %arg11[%c0_160, %c32_161], %368 {strides = array<i32>} : memref<8x64xf32, #tpu.memory_space<vmem>>, vector<8x32xf32>,
    %c6_162 = arith.constant 6 : index
    %c0_163 = arith.constant 0 : index
    %c0_164 = arith.constant 0 : index
    %370 = vector.load %arg10[%c6_162, %c0_163, %c0_164] : memref<8x8x128xf32, #tpu.memory_space<vmem>>, vector<1x8x128xf32>
    %371 = vector.shape_cast %370 : vector<1x8x128xf32> to vector<8x128xf32>
    %372 = arith.addf %371, %344 : vector<8x128xf32>
    %373 = math.tanh %372 : vector<8x128xf32>
    %374 = vector.extract_strided_slice %373 {offsets = [0, 0], sizes = [8, 32], strides = [1, 1]} : vector<8x128xf32> to vector<8x32xf32>
    %cst_165 = arith.constant 5.000000e-01 : f32
    %375 = vector.broadcast %cst_165 : f32 to vector<8x32xf32>
    %376 = arith.mulf %375, %374 : vector<8x32xf32>
    %cst_166 = arith.constant 5.000000e-01 : f32
    %377 = vector.broadcast %cst_166 : f32 to vector<8x32xf32>
    %378 = arith.addf %376, %377 : vector<8x32xf32>
    %379 = vector.extract_strided_slice %373 {offsets = [0, 32], sizes = [8, 32], strides = [1, 1]} : vector<8x128xf32> to vector<8x32xf32>
    %cst_167 = arith.constant 5.000000e-01 : f32
    %380 = vector.broadcast %cst_167 : f32 to vector<8x32xf32>
    %381 = arith.mulf %380, %379 : vector<8x32xf32>
    %cst_168 = arith.constant 5.000000e-01 : f32
    %382 = vector.broadcast %cst_168 : f32 to vector<8x32xf32>
    %383 = arith.addf %381, %382 : vector<8x32xf32>
    %384 = vector.extract_strided_slice %373 {offsets = [0, 64], sizes = [8, 32], strides = [1, 1]} : vector<8x128xf32> to vector<8x32xf32>
    %385 = vector.extract_strided_slice %373 {offsets = [0, 96], sizes = [8, 32], strides = [1, 1]} : vector<8x128xf32> to vector<8x32xf32>
    %cst_169 = arith.constant 5.000000e-01 : f32
    %386 = vector.broadcast %cst_169 : f32 to vector<8x32xf32>
    %387 = arith.mulf %386, %385 : vector<8x32xf32>
    %cst_170 = arith.constant 5.000000e-01 : f32
    %388 = vector.broadcast %cst_170 : f32 to vector<8x32xf32>
    %389 = arith.addf %387, %388 : vector<8x32xf32>
    %390 = arith.mulf %383, %338 : vector<8x32xf32>
    %391 = arith.mulf %378, %384 : vector<8x32xf32>
    %392 = arith.addf %390, %391 : vector<8x32xf32>
    %393 = math.tanh %392 : vector<8x32xf32>
    %394 = arith.mulf %389, %393 : vector<8x32xf32>
    %c0_171 = arith.constant 0 : index
    %c0_172 = arith.constant 0 : index
    %395 = vector.load %arg11[%c0_171, %c0_172] : memref<8x64xf32, #tpu.memory_space<vmem>>, vector<8x32xf32>
    tpu.vector_store %arg11[%c0_171, %c0_172], %394 {strides = array<i32>} : memref<8x64xf32, #tpu.memory_space<vmem>>, vector<8x32xf32>,
    %c0_173 = arith.constant 0 : index
    %c0_174 = arith.constant 0 : index
    %396 = vector.load %arg11[%c0_173, %c0_174] : memref<8x64xf32, #tpu.memory_space<vmem>>, vector<8x64xf32>
    %cst_175 = arith.constant dense<0.000000e+00> : vector<8x256xf32>
    %397 = tpu.matmul %396, %38, %cst_175 {dimension_numbers = #tpu.dot_dimension_numbers<[1], [0], [0], [1], [0, 0, 1, 1], [], []>} : vector<8x64xf32>, vector<64x256xf32>, vector<8x256xf32> -> vector<8x256xf32>
    %398 = vector.extract_strided_slice %397 {offsets = [0, 0], sizes = [8, 128], strides = [1, 1]} : vector<8x256xf32> to vector<8x128xf32>
    %399 = vector.extract_strided_slice %397 {offsets = [0, 128], sizes = [8, 128], strides = [1, 1]} : vector<8x256xf32> to vector<8x128xf32>
    %400 = arith.addf %399, %41 : vector<8x128xf32>
    %401 = math.tanh %400 : vector<8x128xf32>
    %402 = vector.extract_strided_slice %401 {offsets = [0, 0], sizes = [8, 32], strides = [1, 1]} : vector<8x128xf32> to vector<8x32xf32>
    %cst_176 = arith.constant 5.000000e-01 : f32
    %403 = vector.broadcast %cst_176 : f32 to vector<8x32xf32>
    %404 = arith.mulf %403, %402 : vector<8x32xf32>
    %cst_177 = arith.constant 5.000000e-01 : f32
    %405 = vector.broadcast %cst_177 : f32 to vector<8x32xf32>
    %406 = arith.addf %404, %405 : vector<8x32xf32>
    %407 = vector.extract_strided_slice %401 {offsets = [0, 32], sizes = [8, 32], strides = [1, 1]} : vector<8x128xf32> to vector<8x32xf32>
    %cst_178 = arith.constant 5.000000e-01 : f32
    %408 = vector.broadcast %cst_178 : f32 to vector<8x32xf32>
    %409 = arith.mulf %408, %407 : vector<8x32xf32>
    %cst_179 = arith.constant 5.000000e-01 : f32
    %410 = vector.broadcast %cst_179 : f32 to vector<8x32xf32>
    %411 = arith.addf %409, %410 : vector<8x32xf32>
    %412 = vector.extract_strided_slice %401 {offsets = [0, 64], sizes = [8, 32], strides = [1, 1]} : vector<8x128xf32> to vector<8x32xf32>
    %413 = vector.extract_strided_slice %401 {offsets = [0, 96], sizes = [8, 32], strides = [1, 1]} : vector<8x128xf32> to vector<8x32xf32>
    %cst_180 = arith.constant 5.000000e-01 : f32
    %414 = vector.broadcast %cst_180 : f32 to vector<8x32xf32>
    %415 = arith.mulf %414, %413 : vector<8x32xf32>
    %cst_181 = arith.constant 5.000000e-01 : f32
    %416 = vector.broadcast %cst_181 : f32 to vector<8x32xf32>
    %417 = arith.addf %415, %416 : vector<8x32xf32>
    %418 = arith.mulf %411, %366 : vector<8x32xf32>
    %419 = arith.mulf %406, %412 : vector<8x32xf32>
    %420 = arith.addf %418, %419 : vector<8x32xf32>
    %421 = math.tanh %420 : vector<8x32xf32>
    %422 = arith.mulf %417, %421 : vector<8x32xf32>
    %c0_182 = arith.constant 0 : index
    %c32_183 = arith.constant 32 : index
    %423 = vector.load %arg11[%c0_182, %c32_183] : memref<8x64xf32, #tpu.memory_space<vmem>>, vector<8x32xf32>
    tpu.vector_store %arg11[%c0_182, %c32_183], %422 {strides = array<i32>} : memref<8x64xf32, #tpu.memory_space<vmem>>, vector<8x32xf32>,
    %c7_184 = arith.constant 7 : index
    %c0_185 = arith.constant 0 : index
    %c0_186 = arith.constant 0 : index
    %424 = vector.load %arg10[%c7_184, %c0_185, %c0_186] : memref<8x8x128xf32, #tpu.memory_space<vmem>>, vector<1x8x128xf32>
    %425 = vector.shape_cast %424 : vector<1x8x128xf32> to vector<8x128xf32>
    %426 = arith.addf %425, %398 : vector<8x128xf32>
    %427 = math.tanh %426 : vector<8x128xf32>
    %428 = vector.extract_strided_slice %427 {offsets = [0, 0], sizes = [8, 32], strides = [1, 1]} : vector<8x128xf32> to vector<8x32xf32>
    %cst_187 = arith.constant 5.000000e-01 : f32
    %429 = vector.broadcast %cst_187 : f32 to vector<8x32xf32>
    %430 = arith.mulf %429, %428 : vector<8x32xf32>
    %cst_188 = arith.constant 5.000000e-01 : f32
    %431 = vector.broadcast %cst_188 : f32 to vector<8x32xf32>
    %432 = arith.addf %430, %431 : vector<8x32xf32>
    %433 = vector.extract_strided_slice %427 {offsets = [0, 32], sizes = [8, 32], strides = [1, 1]} : vector<8x128xf32> to vector<8x32xf32>
    %cst_189 = arith.constant 5.000000e-01 : f32
    %434 = vector.broadcast %cst_189 : f32 to vector<8x32xf32>
    %435 = arith.mulf %434, %433 : vector<8x32xf32>
    %cst_190 = arith.constant 5.000000e-01 : f32
    %436 = vector.broadcast %cst_190 : f32 to vector<8x32xf32>
    %437 = arith.addf %435, %436 : vector<8x32xf32>
    %438 = vector.extract_strided_slice %427 {offsets = [0, 64], sizes = [8, 32], strides = [1, 1]} : vector<8x128xf32> to vector<8x32xf32>
    %439 = vector.extract_strided_slice %427 {offsets = [0, 96], sizes = [8, 32], strides = [1, 1]} : vector<8x128xf32> to vector<8x32xf32>
    %cst_191 = arith.constant 5.000000e-01 : f32
    %440 = vector.broadcast %cst_191 : f32 to vector<8x32xf32>
    %441 = arith.mulf %440, %439 : vector<8x32xf32>
    %cst_192 = arith.constant 5.000000e-01 : f32
    %442 = vector.broadcast %cst_192 : f32 to vector<8x32xf32>
    %443 = arith.addf %441, %442 : vector<8x32xf32>
    %444 = arith.mulf %437, %392 : vector<8x32xf32>
    %445 = arith.mulf %432, %438 : vector<8x32xf32>
    %446 = arith.addf %444, %445 : vector<8x32xf32>
    %447 = math.tanh %446 : vector<8x32xf32>
    %448 = arith.mulf %443, %447 : vector<8x32xf32>
    %c0_193 = arith.constant 0 : index
    %c0_194 = arith.constant 0 : index
    %449 = vector.load %arg11[%c0_193, %c0_194] : memref<8x64xf32, #tpu.memory_space<vmem>>, vector<8x32xf32>
    tpu.vector_store %arg11[%c0_193, %c0_194], %448 {strides = array<i32>} : memref<8x64xf32, #tpu.memory_space<vmem>>, vector<8x32xf32>,
    %c0_195 = arith.constant 0 : index
    %c0_196 = arith.constant 0 : index
    %450 = vector.load %arg11[%c0_195, %c0_196] : memref<8x64xf32, #tpu.memory_space<vmem>>, vector<8x64xf32>
    %cst_197 = arith.constant dense<0.000000e+00> : vector<8x256xf32>
    %451 = tpu.matmul %450, %38, %cst_197 {dimension_numbers = #tpu.dot_dimension_numbers<[1], [0], [0], [1], [0, 0, 1, 1], [], []>} : vector<8x64xf32>, vector<64x256xf32>, vector<8x256xf32> -> vector<8x256xf32>
    %452 = vector.extract_strided_slice %451 {offsets = [0, 128], sizes = [8, 128], strides = [1, 1]} : vector<8x256xf32> to vector<8x128xf32>
    %453 = arith.addf %452, %41 : vector<8x128xf32>
    %454 = math.tanh %453 : vector<8x128xf32>
    %455 = vector.extract_strided_slice %454 {offsets = [0, 0], sizes = [8, 32], strides = [1, 1]} : vector<8x128xf32> to vector<8x32xf32>
    %cst_198 = arith.constant 5.000000e-01 : f32
    %456 = vector.broadcast %cst_198 : f32 to vector<8x32xf32>
    %457 = arith.mulf %456, %455 : vector<8x32xf32>
    %cst_199 = arith.constant 5.000000e-01 : f32
    %458 = vector.broadcast %cst_199 : f32 to vector<8x32xf32>
    %459 = arith.addf %457, %458 : vector<8x32xf32>
    %460 = vector.extract_strided_slice %454 {offsets = [0, 32], sizes = [8, 32], strides = [1, 1]} : vector<8x128xf32> to vector<8x32xf32>
    %cst_200 = arith.constant 5.000000e-01 : f32
    %461 = vector.broadcast %cst_200 : f32 to vector<8x32xf32>
    %462 = arith.mulf %461, %460 : vector<8x32xf32>
    %cst_201 = arith.constant 5.000000e-01 : f32
    %463 = vector.broadcast %cst_201 : f32 to vector<8x32xf32>
    %464 = arith.addf %462, %463 : vector<8x32xf32>
    %465 = vector.extract_strided_slice %454 {offsets = [0, 64], sizes = [8, 32], strides = [1, 1]} : vector<8x128xf32> to vector<8x32xf32>
    %466 = vector.extract_strided_slice %454 {offsets = [0, 96], sizes = [8, 32], strides = [1, 1]} : vector<8x128xf32> to vector<8x32xf32>
    %cst_202 = arith.constant 5.000000e-01 : f32
    %467 = vector.broadcast %cst_202 : f32 to vector<8x32xf32>
    %468 = arith.mulf %467, %466 : vector<8x32xf32>
    %cst_203 = arith.constant 5.000000e-01 : f32
    %469 = vector.broadcast %cst_203 : f32 to vector<8x32xf32>
    %470 = arith.addf %468, %469 : vector<8x32xf32>
    %471 = arith.mulf %464, %420 : vector<8x32xf32>
    %472 = arith.mulf %459, %465 : vector<8x32xf32>
    %473 = arith.addf %471, %472 : vector<8x32xf32>
    %474 = math.tanh %473 : vector<8x32xf32>
    %475 = arith.mulf %470, %474 : vector<8x32xf32>
    %c0_204 = arith.constant 0 : index
    %c32_205 = arith.constant 32 : index
    %476 = vector.load %arg11[%c0_204, %c32_205] : memref<8x64xf32, #tpu.memory_space<vmem>>, vector<8x32xf32>
    tpu.vector_store %arg11[%c0_204, %c32_205], %475 {strides = array<i32>} : memref<8x64xf32, #tpu.memory_space<vmem>>, vector<8x32xf32>,
    %cst_206 = arith.constant dense<0.000000e+00> : vector<8xf32>
    %477 = vector.multi_reduction <add>, %475, %cst_206 [1] : vector<8x32xf32> to vector<8xf32>
    %478 = vector.shape_cast %477 : vector<8xf32> to vector<8x1xf32>
    %cst_207 = arith.constant 3.200000e+01 : f32
    %479 = vector.broadcast %cst_207 : f32 to vector<8x1xf32>
    %480 = arith.divf %478, %479 : vector<8x1xf32>
    %481 = vector.broadcast %480 : vector<8x1xf32> to vector<8x32xf32>
    %482 = arith.subf %475, %481 : vector<8x32xf32>
    %483 = arith.mulf %482, %482 : vector<8x32xf32>
    %cst_208 = arith.constant dense<0.000000e+00> : vector<8xf32>
    %484 = vector.multi_reduction <add>, %483, %cst_208 [1] : vector<8x32xf32> to vector<8xf32>
    %485 = vector.shape_cast %484 : vector<8xf32> to vector<8x1xf32>
    %cst_209 = arith.constant 3.200000e+01 : f32
    %486 = vector.broadcast %cst_209 : f32 to vector<8x1xf32>
    %487 = arith.divf %485, %486 : vector<8x1xf32>
    %488 = vector.broadcast %480 : vector<8x1xf32> to vector<8x32xf32>
    %489 = arith.subf %475, %488 : vector<8x32xf32>
    %cst_210 = arith.constant 9.99999974E-6 : f32
    %490 = vector.broadcast %cst_210 : f32 to vector<8x1xf32>
    %491 = arith.addf %487, %490 : vector<8x1xf32>
    %492 = math.rsqrt %491 : vector<8x1xf32>
    %493 = vector.broadcast %492 : vector<8x1xf32> to vector<8x32xf32>
    %494 = arith.mulf %489, %493 : vector<8x32xf32>
    %c0_211 = arith.constant 0 : index
    %c0_212 = arith.constant 0 : index
    %495 = vector.load %arg5[%c0_211, %c0_212] : memref<32x128xf32, #tpu.memory_space<vmem>>, vector<32x128xf32>
    %cst_213 = arith.constant dense<0.000000e+00> : vector<8x128xf32>
    %496 = tpu.matmul %494, %495, %cst_213 {dimension_numbers = #tpu.dot_dimension_numbers<[1], [0], [0], [1], [0, 0, 1, 1], [], []>} : vector<8x32xf32>, vector<32x128xf32>, vector<8x128xf32> -> vector<8x128xf32>
    %c0_214 = arith.constant 0 : index
    %c0_215 = arith.constant 0 : index
    %497 = vector.load %arg6[%c0_214, %c0_215] : memref<1x128xf32, #tpu.memory_space<vmem>>, vector<1x128xf32>
    %498 = vector.broadcast %497 : vector<1x128xf32> to vector<8x128xf32>
    %499 = arith.addf %496, %498 : vector<8x128xf32>
    %cst_216 = arith.constant 0.000000e+00 : f32
    %500 = vector.broadcast %cst_216 : f32 to vector<8x128xf32>
    %501 = arith.maximumf %499, %500 : vector<8x128xf32>
    %c0_217 = arith.constant 0 : index
    %c0_218 = arith.constant 0 : index
    %502 = vector.load %arg7[%c0_217, %c0_218] : memref<128x4xf32, #tpu.memory_space<vmem>>, vector<128x4xf32>
    %cst_219 = arith.constant dense<0.000000e+00> : vector<8x4xf32>
    %503 = tpu.matmul %501, %502, %cst_219 {dimension_numbers = #tpu.dot_dimension_numbers<[1], [0], [0], [1], [0, 0, 1, 1], [], []>} : vector<8x128xf32>, vector<128x4xf32>, vector<8x4xf32> -> vector<8x4xf32>
    %c0_220 = arith.constant 0 : index
    %c0_221 = arith.constant 0 : index
    %504 = vector.load %arg8[%c0_220, %c0_221] : memref<1x4xf32, #tpu.memory_space<vmem>>, vector<1x4xf32>
    %505 = vector.broadcast %504 : vector<1x4xf32> to vector<8x4xf32>
    %506 = arith.addf %503, %505 : vector<8x4xf32>
    %c0_222 = arith.constant 0 : index
    %c0_223 = arith.constant 0 : index
    %507 = vector.load %arg9[%c0_222, %c0_223] : memref<8x4xf32, #tpu.memory_space<vmem>>, vector<8x4xf32>
    tpu.vector_store %arg9[%c0_222, %c0_223], %506 {strides = array<i32>} : memref<8x4xf32, #tpu.memory_space<vmem>>, vector<8x4xf32>,
    return
  }
}

</mosaic_0001>

<llo_original>
// kernel: tpu_custom_call.1
$region0: #{tpu_custom_call.1}
  #allocation0 [shape = 'u32[]', space=smem, size = 0x4, offset = 0x4, fixed_abs, tag = 'smem constant byte address 0x4 - core index']
  #allocation1 [shape = 'u32[72,128]{1,0:T(1,128)}', space=vmem, size = 0x9000, scoped, tag = 'internal scratch']
  #allocation2 [shape = 'f32[8,8,128]{2,1,0:T(8,128)}', space=vmem, size = 0x8000, scoped, tag = 'scratch operand']
  #allocation3 [shape = 'f32[8,64]{1,0:T(8,128)}', space=vmem, size = 0x1000, scoped, tag = 'scratch operand']
  %s0 = inlined_call_operand.vmem [shape: f32[64,16], index: 0, kind: input, shape index: {}]
  %s1 = inlined_call_operand.vmem [shape: f32[16,128], index: 1, kind: input, shape index: {}]
  %s2 = inlined_call_operand.vmem [shape: f32[1,128], index: 2, kind: input, shape index: {}]
  %s3 = inlined_call_operand.vmem [shape: f32[64,256], index: 3, kind: input, shape index: {}]
  %s4 = inlined_call_operand.vmem [shape: f32[1,128], index: 4, kind: input, shape index: {}]
  %s5 = inlined_call_operand.vmem [shape: f32[32,128], index: 5, kind: input, shape index: {}]
  %s6 = inlined_call_operand.vmem [shape: f32[1,128], index: 6, kind: input, shape index: {}]
  %s7 = inlined_call_operand.vmem [shape: f32[128,4], index: 7, kind: input, shape index: {}]
  %s8 = inlined_call_operand.vmem [shape: f32[1,4], index: 8, kind: input, shape index: {}]
  %s9 = inlined_call_operand.vmem [shape: f32[8,4], index: 9, kind: output, shape index: {}]
  %s10 = sld [smem:[#allocation0]]
  $region46: #{tpu_custom_call.1} parent=0
    _
  %s12 = ssub.s32 1, %s10
  %s13 = scalar_select 0, %s12, %s10
  // Predicated region
  $region2: #{tpu_custom_call.1} parent=0 // pred_check
    _
  $region3: #{tpu_custom_call.1} parent=0 // pred_check_branch
    %15 = sbr.rel (0) target = $region5
  $region4: #{tpu_custom_call.1} parent=0 // pred_region
    _
  $region5: #{tpu_custom_call.1} parent=0 // pred_fallthru
    _
  // Predicated region
  $region6: #{tpu_custom_call.1} parent=0 // pred_check
    _
  $region7: #{tpu_custom_call.1} parent=0 // pred_check_branch
    %17 = sbr.rel (0) target = $region9
  $region8: #{tpu_custom_call.1} parent=0 // pred_region
    _
  $region9: #{tpu_custom_call.1} parent=0 // pred_fallthru
    _
  // Predicated region
  $region10: #{tpu_custom_call.1} parent=0 // pred_check
    _
  $region11: #{tpu_custom_call.1} parent=0 // pred_check_branch
    %19 = sbr.rel (0) target = $region13
  $region12: #{tpu_custom_call.1} parent=0 // pred_region
    _
  $region13: #{tpu_custom_call.1} parent=0 // pred_fallthru
    _
  // Predicated region
  $region14: #{tpu_custom_call.1} parent=0 // pred_check
    _
  $region15: #{tpu_custom_call.1} parent=0 // pred_check_branch
    %21 = sbr.rel (0) target = $region17
  $region16: #{tpu_custom_call.1} parent=0 // pred_region
    _
  $region17: #{tpu_custom_call.1} parent=0 // pred_fallthru
    _
  // Predicated region
  $region18: #{tpu_custom_call.1} parent=0 // pred_check
    _
  $region19: #{tpu_custom_call.1} parent=0 // pred_check_branch
    %23 = sbr.rel (0) target = $region21
  $region20: #{tpu_custom_call.1} parent=0 // pred_region
    _
  $region21: #{tpu_custom_call.1} parent=0 // pred_fallthru
    _
  // Predicated region
  $region22: #{tpu_custom_call.1} parent=0 // pred_check
    _
  $region23: #{tpu_custom_call.1} parent=0 // pred_check_branch
    %25 = sbr.rel (0) target = $region25
  $region24: #{tpu_custom_call.1} parent=0 // pred_region
    _
  $region25: #{tpu_custom_call.1} parent=0 // pred_fallthru
    _
  // Predicated region
  $region26: #{tpu_custom_call.1} parent=0 // pred_check
    _
  $region27: #{tpu_custom_call.1} parent=0 // pred_check_branch
    %27 = sbr.rel (0) target = $region29
  $region28: #{tpu_custom_call.1} parent=0 // pred_region
    _
  $region29: #{tpu_custom_call.1} parent=0 // pred_fallthru
    _
  // Predicated region
  $region30: #{tpu_custom_call.1} parent=0 // pred_check
    _
  $region31: #{tpu_custom_call.1} parent=0 // pred_check_branch
    %29 = sbr.rel (0) target = $region33
  $region32: #{tpu_custom_call.1} parent=0 // pred_region
    _
  $region33: #{tpu_custom_call.1} parent=0 // pred_fallthru
    _
  // Predicated region
  $region34: #{tpu_custom_call.1} parent=0 // pred_check
    _
  $region35: #{tpu_custom_call.1} parent=0 // pred_check_branch
    %31 = sbr.rel (0) target = $region37
  $region36: #{tpu_custom_call.1} parent=0 // pred_region
    _
  $region37: #{tpu_custom_call.1} parent=0 // pred_fallthru
    _
  %v32 = vld [vmem:[%s0] sm:$0xff]
  %v33 = vld [vmem:[%s0 + $0x8] sm:$0xff]
  %v34 = vld [vmem:[%s0 + $0x10] sm:$0xff]
  %v35 = vld [vmem:[%s0 + $0x18] sm:$0xff]
  %v36 = vld [vmem:[%s0 + $0x20] sm:$0xff]
  %v37 = vld [vmem:[%s0 + $0x28] sm:$0xff]
  %v38 = vld [vmem:[%s0 + $0x30] sm:$0xff]
  %v39 = vld [vmem:[%s0 + $0x38] sm:$0xff]
  %v40 = vld [vmem:[%s1] sm:$0xff]
  %v41 = vld [vmem:[%s1 + $0x8] sm:$0xff]
  %v42 = vld [vmem:[%s2] sm:$0x1]
  %v44 = vperm.slane %v42, 0
  %vm46 = vcmask 130048
  %v48 = vsel %vm46, %v32, 0
  %v51 = vsel %vm46, %v33, 0
  %v54 = vsel %vm46, %v34, 0
  %v57 = vsel %vm46, %v35, 0
  %v60 = vsel %vm46, %v36, 0
  %v63 = vsel %vm46, %v37, 0
  %v66 = vsel %vm46, %v38, 0
  %v69 = vsel %vm46, %v39, 0
  %71 = vmatpush.msra.mxu0 0.0
  %72 = vmatpush.msra.mxu0 0.0
  %73 = vmatpush.msra.mxu0 0.0
  %74 = vmatpush.msra.mxu0 0.0
  %75 = vmatpush.msra.mxu0 0.0
  %76 = vmatpush.msra.mxu0 0.0
  %77 = vmatpush.msra.mxu0 0.0
  %78 = vmatpush.msra.mxu0 0.0
  %79 = vmatpush.msra.mxu0 0.0
  %80 = vmatpush.msra.mxu0 0.0
  %81 = vmatpush.msra.mxu0 0.0
  %82 = vmatpush.msra.mxu0 0.0
  %83 = vmatpush.msra.mxu0 0.0
  %84 = vmatpush.msra.mxu0 0.0
  %85 = vmatpush.msra.mxu0 %v41
  %86 = vmatpush.msra.mxu0 %v40
  %87 = vmatmul.f32.gmra.mxu0 %v48
  %v88 = vpop.f32.mrf.mxu0
  %v89 = vadd.f32 %v44, %v88
  %90 = vmatmul.f32.gmra.mxu0 %v51
  %v91 = vpop.f32.mrf.mxu0
  %v92 = vadd.f32 %v44, %v91
  %93 = vmatmul.f32.gmra.mxu0 %v54
  %v94 = vpop.f32.mrf.mxu0
  %v95 = vadd.f32 %v44, %v94
  %96 = vmatmul.f32.gmra.mxu0 %v57
  %v97 = vpop.f32.mrf.mxu0
  %v98 = vadd.f32 %v44, %v97
  %99 = vmatmul.f32.gmra.mxu0 %v60
  %v100 = vpop.f32.mrf.mxu0
  %v101 = vadd.f32 %v44, %v100
  %102 = vmatmul.f32.gmra.mxu0 %v63
  %v103 = vpop.f32.mrf.mxu0
  %v104 = vadd.f32 %v44, %v103
  %105 = vmatmul.f32.gmra.mxu0 %v66
  %v106 = vpop.f32.mrf.mxu0
  %v107 = vadd.f32 %v44, %v106
  %108 = vmatmul.f32.gmra.mxu0 %v69
  %v109 = vpop.f32.mrf.mxu0
  %v110 = vadd.f32 %v44, %v109
  %111 = vdwg.mxu0
  %112 = vst [vmem:[#allocation2] sm:$0xff] %v89
  %s113 = scalar_lea.vmem [#allocation2], 8
  %114 = vst [vmem:[%s113] sm:$0xff] %v92
  %s115 = scalar_lea.vmem [#allocation2], 16
  %116 = vst [vmem:[%s115] sm:$0xff] %v95
  %s117 = scalar_lea.vmem [#allocation2], 24
  %118 = vst [vmem:[%s117] sm:$0xff] %v98
  %s119 = scalar_lea.vmem [#allocation2], 32
  %120 = vst [vmem:[%s119] sm:$0xff] %v101
  %s121 = scalar_lea.vmem [#allocation2], 40
  %122 = vst [vmem:[%s121] sm:$0xff] %v104
  %s123 = scalar_lea.vmem [#allocation2], 48
  %124 = vst [vmem:[%s123] sm:$0xff] %v107
  %s125 = scalar_lea.vmem [#allocation2], 56
  %126 = vst [vmem:[%s125] sm:$0xff] %v110
  %v127 = vld [vmem:[%s3] sm:$0xff]
  %v128 = vld [vmem:[%s3 + $0x8] sm:$0xff]
  %v129 = vld [vmem:[%s3 + $0x10] sm:$0xff]
  %v130 = vld [vmem:[%s3 + $0x18] sm:$0xff]
  %v131 = vld [vmem:[%s3 + $0x20] sm:$0xff]
  %v132 = vld [vmem:[%s3 + $0x28] sm:$0xff]
  %v133 = vld [vmem:[%s3 + $0x30] sm:$0xff]
  %v134 = vld [vmem:[%s3 + $0x38] sm:$0xff]
  %v135 = vld [vmem:[%s3 + $0x40] sm:$0xff]
  %v136 = vld [vmem:[%s3 + $0x48] sm:$0xff]
  %v137 = vld [vmem:[%s3 + $0x50] sm:$0xff]
  %v138 = vld [vmem:[%s3 + $0x58] sm:$0xff]
  %v139 = vld [vmem:[%s3 + $0x60] sm:$0xff]
  %v140 = vld [vmem:[%s3 + $0x68] sm:$0xff]
  %v141 = vld [vmem:[%s3 + $0x70] sm:$0xff]
  %v142 = vld [vmem:[%s3 + $0x78] sm:$0xff]
  %v143 = vld [vmem:[%s4] sm:$0x1]
  %v145 = vperm.slane %v143, 0
  %vm147 = vcmask 523264
  %148 = vst.msk [vmem:[#allocation3] sm:$0xff] %vm147, 0.0
  %v149 = vld [vmem:[#allocation2] sm:$0xff]
  %v150 = vadd.f32 %v149, 0.0
  %v151 = vtanh.pop %v150
  %v152 = vmul.f32 %v151, 0.5
  %v153 = vadd.f32 %v152, 0.5
  %v154 = vmul.f32 %v153, 0.0
  %156 = vrot.lane.b32.xlu0 %v151, 64
  %v157 = vpop.permute.xlu0 %156
  %v159 = vmul.f32 %v153, %v157
  %161 = vrot.lane.b32.xlu0 %v159, 32
  %v162 = vpop.permute.xlu0 %161
  %v164 = vadd.f32 %v154, %v162
  %v165 = vtanh.pop %v164
  %167 = vrot.lane.b32.xlu0 %v165, 64
  %v168 = vpop.permute.xlu0 %167
  %v170 = vmul.f32 %v153, %v168
  %172 = vrot.lane.b32.xlu0 %v170, 32
  %v173 = vpop.permute.xlu0 %172
  %vm175 = vcmask 261120
  %176 = vst.msk [vmem:[#allocation3] sm:$0xff] %vm175, %v173
  %v177 = vld [vmem:[#allocation3] sm:$0xff]
  %v179 = vsel %vm147, %v177, 0
  %181 = vmatpush.msra.mxu0 0.0
  %182 = vmatpush.msra.mxu0 0.0
  %183 = vmatpush.msra.mxu0 0.0
  %184 = vmatpush.msra.mxu0 0.0
  %185 = vmatpush.msra.mxu0 0.0
  %186 = vmatpush.msra.mxu0 0.0
  %187 = vmatpush.msra.mxu0 0.0
  %188 = vmatpush.msra.mxu0 0.0
  %189 = vmatpush.msra.mxu0 %v141
  %190 = vmatpush.msra.mxu0 %v139
  %191 = vmatpush.msra.mxu0 %v137
  %192 = vmatpush.msra.mxu0 %v135
  %193 = vmatpush.msra.mxu0 %v133
  %194 = vmatpush.msra.mxu0 %v131
  %195 = vmatpush.msra.mxu0 %v129
  %196 = vmatpush.msra.mxu0 %v127
  %197 = vmatmul.f32.gmra.mxu0 %v179
  %v198 = vpop.f32.mrf.mxu0
  %v199 = vadd.f32 0.0, %v198
  %200 = vdwg.mxu0
  %201 = vmatpush.msra.mxu0 0.0
  %202 = vmatpush.msra.mxu0 0.0
  %203 = vmatpush.msra.mxu0 0.0
  %204 = vmatpush.msra.mxu0 0.0
  %205 = vmatpush.msra.mxu0 0.0
  %206 = vmatpush.msra.mxu0 0.0
  %207 = vmatpush.msra.mxu0 0.0
  %208 = vmatpush.msra.mxu0 0.0
  %209 = vmatpush.msra.mxu0 %v142
  %210 = vmatpush.msra.mxu0 %v140
  %211 = vmatpush.msra.mxu0 %v138
  %212 = vmatpush.msra.mxu0 %v136
  %213 = vmatpush.msra.mxu0 %v134
  %214 = vmatpush.msra.mxu0 %v132
  %215 = vmatpush.msra.mxu0 %v130
  %216 = vmatpush.msra.mxu0 %v128
  %217 = vmatmul.f32.gmra.mxu0 %v179
  %v218 = vpop.f32.mrf.mxu0
  %v219 = vadd.f32 0.0, %v218
  %220 = vdwg.mxu0
  %v221 = vadd.f32 %v219, %v145
  %v222 = vtanh.pop %v221
  %v223 = vmul.f32 %v222, 0.5
  %v224 = vadd.f32 %v223, 0.5
  %v225 = vmul.f32 %v224, 0.0
  %227 = vrot.lane.b32.xlu0 %v222, 64
  %v228 = vpop.permute.xlu0 %227
  %v230 = vmul.f32 %v224, %v228
  %232 = vrot.lane.b32.xlu0 %v230, 32
  %v233 = vpop.permute.xlu0 %232
  %v235 = vadd.f32 %v225, %v233
  %v236 = vtanh.pop %v235
  %238 = vrot.lane.b32.xlu0 %v236, 64
  %v239 = vpop.permute.xlu0 %238
  %v241 = vmul.f32 %v224, %v239
  %243 = vrot.lane.b32.xlu0 %v241, 64
  %v244 = vpop.permute.xlu0 %243
  %vm246 = vcmask 523520
  %247 = vst.msk [vmem:[#allocation3] sm:$0xff] %vm246, %v244
  %v248 = vld [vmem:[%s113] sm:$0xff]
  %v249 = vadd.f32 %v248, %v199
  %v250 = vtanh.pop %v249
  %v251 = vmul.f32 %v250, 0.5
  %v252 = vadd.f32 %v251, 0.5
  %v253 = vmul.f32 %v252, %v164
  %255 = vrot.lane.b32.xlu0 %v250, 64
  %v256 = vpop.permute.xlu0 %255
  %v258 = vmul.f32 %v252, %v256
  %260 = vrot.lane.b32.xlu0 %v258, 32
  %v261 = vpop.permute.xlu0 %260
  %v263 = vadd.f32 %v253, %v261
  %v264 = vtanh.pop %v263
  %266 = vrot.lane.b32.xlu0 %v264, 64
  %v267 = vpop.permute.xlu0 %266
  %v269 = vmul.f32 %v252, %v267
  %271 = vrot.lane.b32.xlu0 %v269, 32
  %v272 = vpop.permute.xlu0 %271
  %274 = vst.msk [vmem:[#allocation3] sm:$0xff] %vm175, %v272
  %v275 = vld [vmem:[#allocation3] sm:$0xff]
  %v277 = vsel %vm147, %v275, 0
  %279 = vmatpush.msra.mxu0 0.0
  %280 = vmatpush.msra.mxu0 0.0
  %281 = vmatpush.msra.mxu0 0.0
  %282 = vmatpush.msra.mxu0 0.0
  %283 = vmatpush.msra.mxu0 0.0
  %284 = vmatpush.msra.mxu0 0.0
  %285 = vmatpush.msra.mxu0 0.0
  %286 = vmatpush.msra.mxu0 0.0
  %287 = vmatpush.msra.mxu0 %v141
  %288 = vmatpush.msra.mxu0 %v139
  %289 = vmatpush.msra.mxu0 %v137
  %290 = vmatpush.msra.mxu0 %v135
  %291 = vmatpush.msra.mxu0 %v133
  %292 = vmatpush.msra.mxu0 %v131
  %293 = vmatpush.msra.mxu0 %v129
  %294 = vmatpush.msra.mxu0 %v127
  %295 = vmatmul.f32.gmra.mxu0 %v277
  %v296 = vpop.f32.mrf.mxu0
  %v297 = vadd.f32 0.0, %v296
  %298 = vdwg.mxu0
  %299 = vmatpush.msra.mxu0 0.0
  %300 = vmatpush.msra.mxu0 0.0
  %301 = vmatpush.msra.mxu0 0.0
  %302 = vmatpush.msra.mxu0 0.0
  %303 = vmatpush.msra.mxu0 0.0
  %304 = vmatpush.msra.mxu0 0.0
  %305 = vmatpush.msra.mxu0 0.0
  %306 = vmatpush.msra.mxu0 0.0
  %307 = vmatpush.msra.mxu0 %v142
  %308 = vmatpush.msra.mxu0 %v140
  %309 = vmatpush.msra.mxu0 %v138
  %310 = vmatpush.msra.mxu0 %v136
  %311 = vmatpush.msra.mxu0 %v134
  %312 = vmatpush.msra.mxu0 %v132
  %313 = vmatpush.msra.mxu0 %v130
  %314 = vmatpush.msra.mxu0 %v128
  %315 = vmatmul.f32.gmra.mxu0 %v277
  %v316 = vpop.f32.mrf.mxu0
  %v317 = vadd.f32 0.0, %v316
  %318 = vdwg.mxu0
  %v319 = vadd.f32 %v317, %v145
  %v320 = vtanh.pop %v319
  %v321 = vmul.f32 %v320, 0.5
  %v322 = vadd.f32 %v321, 0.5
  %v323 = vmul.f32 %v322, %v235
  %325 = vrot.lane.b32.xlu0 %v320, 64
  %v326 = vpop.permute.xlu0 %325
  %v328 = vmul.f32 %v322, %v326
  %330 = vrot.lane.b32.xlu0 %v328, 32
  %v331 = vpop.permute.xlu0 %330
  %v333 = vadd.f32 %v323, %v331
  %v334 = vtanh.pop %v333
  %336 = vrot.lane.b32.xlu0 %v334, 64
  %v337 = vpop.permute.xlu0 %336
  %v339 = vmul.f32 %v322, %v337
  %341 = vrot.lane.b32.xlu0 %v339, 64
  %v342 = vpop.permute.xlu0 %341
  %344 = vst.msk [vmem:[#allocation3] sm:$0xff] %vm246, %v342
  %v345 = vld [vmem:[%s115] sm:$0xff]
  %v346 = vadd.f32 %v345, %v297
  %v347 = vtanh.pop %v346
  %v348 = vmul.f32 %v347, 0.5
  %v349 = vadd.f32 %v348, 0.5
  %v350 = vmul.f32 %v349, %v263
  %352 = vrot.lane.b32.xlu0 %v347, 64
  %v353 = vpop.permute.xlu0 %352
  %v355 = vmul.f32 %v349, %v353
  %357 = vrot.lane.b32.xlu0 %v355, 32
  %v358 = vpop.permute.xlu0 %357
  %v360 = vadd.f32 %v350, %v358
  %v361 = vtanh.pop %v360
  %363 = vrot.lane.b32.xlu0 %v361, 64
  %v364 = vpop.permute.xlu0 %363
  %v366 = vmul.f32 %v349, %v364
  %368 = vrot.lane.b32.xlu0 %v366, 32
  %v369 = vpop.permute.xlu0 %368
  %371 = vst.msk [vmem:[#allocation3] sm:$0xff] %vm175, %v369
  %v372 = vld [vmem:[#allocation3] sm:$0xff]
  %v374 = vsel %vm147, %v372, 0
  %376 = vmatpush.msra.mxu0 0.0
  %377 = vmatpush.msra.mxu0 0.0
  %378 = vmatpush.msra.mxu0 0.0
  %379 = vmatpush.msra.mxu0 0.0
  %380 = vmatpush.msra.mxu0 0.0
  %381 = vmatpush.msra.mxu0 0.0
  %382 = vmatpush.msra.mxu0 0.0
  %383 = vmatpush.msra.mxu0 0.0
  %384 = vmatpush.msra.mxu0 %v141
  %385 = vmatpush.msra.mxu0 %v139
  %386 = vmatpush.msra.mxu0 %v137
  %387 = vmatpush.msra.mxu0 %v135
  %388 = vmatpush.msra.mxu0 %v133
  %389 = vmatpush.msra.mxu0 %v131
  %390 = vmatpush.msra.mxu0 %v129
  %391 = vmatpush.msra.mxu0 %v127
  %392 = vmatmul.f32.gmra.mxu0 %v374
  %v393 = vpop.f32.mrf.mxu0
  %v394 = vadd.f32 0.0, %v393
  %395 = vdwg.mxu0
  %396 = vmatpush.msra.mxu0 0.0
  %397 = vmatpush.msra.mxu0 0.0
  %398 = vmatpush.msra.mxu0 0.0
  %399 = vmatpush.msra.mxu0 0.0
  %400 = vmatpush.msra.mxu0 0.0
  %401 = vmatpush.msra.mxu0 0.0
  %402 = vmatpush.msra.mxu0 0.0
  %403 = vmatpush.msra.mxu0 0.0
  %404 = vmatpush.msra.mxu0 %v142
  %405 = vmatpush.msra.mxu0 %v140
  %406 = vmatpush.msra.mxu0 %v138
  %407 = vmatpush.msra.mxu0 %v136
  %408 = vmatpush.msra.mxu0 %v134
  %409 = vmatpush.msra.mxu0 %v132
  %410 = vmatpush.msra.mxu0 %v130
  %411 = vmatpush.msra.mxu0 %v128
  %412 = vmatmul.f32.gmra.mxu0 %v374
  %v413 = vpop.f32.mrf.mxu0
  %v414 = vadd.f32 0.0, %v413
  %415 = vdwg.mxu0
  %v416 = vadd.f32 %v414, %v145
  %v417 = vtanh.pop %v416
  %v418 = vmul.f32 %v417, 0.5
  %v419 = vadd.f32 %v418, 0.5
  %v420 = vmul.f32 %v419, %v333
  %422 = vrot.lane.b32.xlu0 %v417, 64
  %v423 = vpop.permute.xlu0 %422
  %v425 = vmul.f32 %v419, %v423
  %427 = vrot.lane.b32.xlu0 %v425, 32
  %v428 = vpop.permute.xlu0 %427
  %v430 = vadd.f32 %v420, %v428
  %v431 = vtanh.pop %v430
  %433 = vrot.lane.b32.xlu0 %v431, 64
  %v434 = vpop.permute.xlu0 %433
  %v436 = vmul.f32 %v419, %v434
  %438 = vrot.lane.b32.xlu0 %v436, 64
  %v439 = vpop.permute.xlu0 %438
  %441 = vst.msk [vmem:[#allocation3] sm:$0xff] %vm246, %v439
  %v442 = vld [vmem:[%s117] sm:$0xff]
  %v443 = vadd.f32 %v442, %v394
  %v444 = vtanh.pop %v443
  %v445 = vmul.f32 %v444, 0.5
  %v446 = vadd.f32 %v445, 0.5
  %v447 = vmul.f32 %v446, %v360
  %449 = vrot.lane.b32.xlu0 %v444, 64
  %v450 = vpop.permute.xlu0 %449
  %v452 = vmul.f32 %v446, %v450
  %454 = vrot.lane.b32.xlu0 %v452, 32
  %v455 = vpop.permute.xlu0 %454
  %v457 = vadd.f32 %v447, %v455
  %v458 = vtanh.pop %v457
  %460 = vrot.lane.b32.xlu0 %v458, 64
  %v461 = vpop.permute.xlu0 %460
  %v463 = vmul.f32 %v446, %v461
  %465 = vrot.lane.b32.xlu0 %v463, 32
  %v466 = vpop.permute.xlu0 %465
  %468 = vst.msk [vmem:[#allocation3] sm:$0xff] %vm175, %v466
  %v469 = vld [vmem:[#allocation3] sm:$0xff]
  %v471 = vsel %vm147, %v469, 0
  %473 = vmatpush.msra.mxu0 0.0
  %474 = vmatpush.msra.mxu0 0.0
  %475 = vmatpush.msra.mxu0 0.0
  %476 = vmatpush.msra.mxu0 0.0
  %477 = vmatpush.msra.mxu0 0.0
  %478 = vmatpush.msra.mxu0 0.0
  %479 = vmatpush.msra.mxu0 0.0
  %480 = vmatpush.msra.mxu0 0.0
  %481 = vmatpush.msra.mxu0 %v141
  %482 = vmatpush.msra.mxu0 %v139
  %483 = vmatpush.msra.mxu0 %v137
  %484 = vmatpush.msra.mxu0 %v135
  %485 = vmatpush.msra.mxu0 %v133
  %486 = vmatpush.msra.mxu0 %v131
  %487 = vmatpush.msra.mxu0 %v129
  %488 = vmatpush.msra.mxu0 %v127
  %489 = vmatmul.f32.gmra.mxu0 %v471
  %v490 = vpop.f32.mrf.mxu0
  %v491 = vadd.f32 0.0, %v490
  %492 = vdwg.mxu0
  %493 = vmatpush.msra.mxu0 0.0
  %494 = vmatpush.msra.mxu0 0.0
  %495 = vmatpush.msra.mxu0 0.0
  %496 = vmatpush.msra.mxu0 0.0
  %497 = vmatpush.msra.mxu0 0.0
  %498 = vmatpush.msra.mxu0 0.0
  %499 = vmatpush.msra.mxu0 0.0
  %500 = vmatpush.msra.mxu0 0.0
  %501 = vmatpush.msra.mxu0 %v142
  %502 = vmatpush.msra.mxu0 %v140
  %503 = vmatpush.msra.mxu0 %v138
  %504 = vmatpush.msra.mxu0 %v136
  %505 = vmatpush.msra.mxu0 %v134
  %506 = vmatpush.msra.mxu0 %v132
  %507 = vmatpush.msra.mxu0 %v130
  %508 = vmatpush.msra.mxu0 %v128
  %509 = vmatmul.f32.gmra.mxu0 %v471
  %v510 = vpop.f32.mrf.mxu0
  %v511 = vadd.f32 0.0, %v510
  %512 = vdwg.mxu0
  %v513 = vadd.f32 %v511, %v145
  %v514 = vtanh.pop %v513
  %v515 = vmul.f32 %v514, 0.5
  %v516 = vadd.f32 %v515, 0.5
  %v517 = vmul.f32 %v516, %v430
  %519 = vrot.lane.b32.xlu0 %v514, 64
  %v520 = vpop.permute.xlu0 %519
  %v522 = vmul.f32 %v516, %v520
  %524 = vrot.lane.b32.xlu0 %v522, 32
  %v525 = vpop.permute.xlu0 %524
  %v527 = vadd.f32 %v517, %v525
  %v528 = vtanh.pop %v527
  %530 = vrot.lane.b32.xlu0 %v528, 64
  %v531 = vpop.permute.xlu0 %530
  %v533 = vmul.f32 %v516, %v531
  %535 = vrot.lane.b32.xlu0 %v533, 64
  %v536 = vpop.permute.xlu0 %535
  %538 = vst.msk [vmem:[#allocation3] sm:$0xff] %vm246, %v536
  %v539 = vld [vmem:[%s119] sm:$0xff]
  %v540 = vadd.f32 %v539, %v491
  %v541 = vtanh.pop %v540
  %v542 = vmul.f32 %v541, 0.5
  %v543 = vadd.f32 %v542, 0.5
  %v544 = vmul.f32 %v543, %v457
  %546 = vrot.lane.b32.xlu0 %v541, 64
  %v547 = vpop.permute.xlu0 %546
  %v549 = vmul.f32 %v543, %v547
  %551 = vrot.lane.b32.xlu0 %v549, 32
  %v552 = vpop.permute.xlu0 %551
  %v554 = vadd.f32 %v544, %v552
  %v555 = vtanh.pop %v554
  %557 = vrot.lane.b32.xlu0 %v555, 64
  %v558 = vpop.permute.xlu0 %557
  %v560 = vmul.f32 %v543, %v558
  %562 = vrot.lane.b32.xlu0 %v560, 32
  %v563 = vpop.permute.xlu0 %562
  %565 = vst.msk [vmem:[#allocation3] sm:$0xff] %vm175, %v563
  %v566 = vld [vmem:[#allocation3] sm:$0xff]
  %v568 = vsel %vm147, %v566, 0
  %570 = vmatpush.msra.mxu0 0.0
  %571 = vmatpush.msra.mxu0 0.0
  %572 = vmatpush.msra.mxu0 0.0
  %573 = vmatpush.msra.mxu0 0.0
  %574 = vmatpush.msra.mxu0 0.0
  %575 = vmatpush.msra.mxu0 0.0
  %576 = vmatpush.msra.mxu0 0.0
  %577 = vmatpush.msra.mxu0 0.0
  %578 = vmatpush.msra.mxu0 %v141
  %579 = vmatpush.msra.mxu0 %v139
  %580 = vmatpush.msra.mxu0 %v137
  %581 = vmatpush.msra.mxu0 %v135
  %582 = vmatpush.msra.mxu0 %v133
  %583 = vmatpush.msra.mxu0 %v131
  %584 = vmatpush.msra.mxu0 %v129
  %585 = vmatpush.msra.mxu0 %v127
  %586 = vmatmul.f32.gmra.mxu0 %v568
  %v587 = vpop.f32.mrf.mxu0
  %v588 = vadd.f32 0.0, %v587
  %589 = vdwg.mxu0
  %590 = vmatpush.msra.mxu0 0.0
  %591 = vmatpush.msra.mxu0 0.0
  %592 = vmatpush.msra.mxu0 0.0
  %593 = vmatpush.msra.mxu0 0.0
  %594 = vmatpush.msra.mxu0 0.0
  %595 = vmatpush.msra.mxu0 0.0
  %596 = vmatpush.msra.mxu0 0.0
  %597 = vmatpush.msra.mxu0 0.0
  %598 = vmatpush.msra.mxu0 %v142
  %599 = vmatpush.msra.mxu0 %v140
  %600 = vmatpush.msra.mxu0 %v138
  %601 = vmatpush.msra.mxu0 %v136
  %602 = vmatpush.msra.mxu0 %v134
  %603 = vmatpush.msra.mxu0 %v132
  %604 = vmatpush.msra.mxu0 %v130
  %605 = vmatpush.msra.mxu0 %v128
  %606 = vmatmul.f32.gmra.mxu0 %v568
  %v607 = vpop.f32.mrf.mxu0
  %v608 = vadd.f32 0.0, %v607
  %609 = vdwg.mxu0
  %v610 = vadd.f32 %v608, %v145
  %v611 = vtanh.pop %v610
  %v612 = vmul.f32 %v611, 0.5
  %v613 = vadd.f32 %v612, 0.5
  %v614 = vmul.f32 %v613, %v527
  %616 = vrot.lane.b32.xlu0 %v611, 64
  %v617 = vpop.permute.xlu0 %616
  %v619 = vmul.f32 %v613, %v617
  %621 = vrot.lane.b32.xlu0 %v619, 32
  %v622 = vpop.permute.xlu0 %621
  %v624 = vadd.f32 %v614, %v622
  %v625 = vtanh.pop %v624
  %627 = vrot.lane.b32.xlu0 %v625, 64
  %v628 = vpop.permute.xlu0 %627
  %v630 = vmul.f32 %v613, %v628
  %632 = vrot.lane.b32.xlu0 %v630, 64
  %v633 = vpop.permute.xlu0 %632
  %635 = vst.msk [vmem:[#allocation3] sm:$0xff] %vm246, %v633
  %v636 = vld [vmem:[%s121] sm:$0xff]
  %v637 = vadd.f32 %v636, %v588
  %v638 = vtanh.pop %v637
  %v639 = vmul.f32 %v638, 0.5
  %v640 = vadd.f32 %v639, 0.5
  %v641 = vmul.f32 %v640, %v554
  %643 = vrot.lane.b32.xlu0 %v638, 64
  %v644 = vpop.permute.xlu0 %643
  %v646 = vmul.f32 %v640, %v644
  %648 = vrot.lane.b32.xlu0 %v646, 32
  %v649 = vpop.permute.xlu0 %648
  %v651 = vadd.f32 %v641, %v649
  %v652 = vtanh.pop %v651
  %654 = vrot.lane.b32.xlu0 %v652, 64
  %v655 = vpop.permute.xlu0 %654
  %v657 = vmul.f32 %v640, %v655
  %659 = vrot.lane.b32.xlu0 %v657, 32
  %v660 = vpop.permute.xlu0 %659
  %662 = vst.msk [vmem:[#allocation3] sm:$0xff] %vm175, %v660
  %v663 = vld [vmem:[#allocation3] sm:$0xff]
  %v665 = vsel %vm147, %v663, 0
  %667 = vmatpush.msra.mxu0 0.0
  %668 = vmatpush.msra.mxu0 0.0
  %669 = vmatpush.msra.mxu0 0.0
  %670 = vmatpush.msra.mxu0 0.0
  %671 = vmatpush.msra.mxu0 0.0
  %672 = vmatpush.msra.mxu0 0.0
  %673 = vmatpush.msra.mxu0 0.0
  %674 = vmatpush.msra.mxu0 0.0
  %675 = vmatpush.msra.mxu0 %v141
  %676 = vmatpush.msra.mxu0 %v139
  %677 = vmatpush.msra.mxu0 %v137
  %678 = vmatpush.msra.mxu0 %v135
  %679 = vmatpush.msra.mxu0 %v133
  %680 = vmatpush.msra.mxu0 %v131
  %681 = vmatpush.msra.mxu0 %v129
  %682 = vmatpush.msra.mxu0 %v127
  %683 = vmatmul.f32.gmra.mxu0 %v665
  %v684 = vpop.f32.mrf.mxu0
  %v685 = vadd.f32 0.0, %v684
  %686 = vdwg.mxu0
  %687 = vmatpush.msra.mxu0 0.0
  %688 = vmatpush.msra.mxu0 0.0
  %689 = vmatpush.msra.mxu0 0.0
  %690 = vmatpush.msra.mxu0 0.0
  %691 = vmatpush.msra.mxu0 0.0
  %692 = vmatpush.msra.mxu0 0.0
  %693 = vmatpush.msra.mxu0 0.0
  %694 = vmatpush.msra.mxu0 0.0
  %695 = vmatpush.msra.mxu0 %v142
  %696 = vmatpush.msra.mxu0 %v140
  %697 = vmatpush.msra.mxu0 %v138
  %698 = vmatpush.msra.mxu0 %v136
  %699 = vmatpush.msra.mxu0 %v134
  %700 = vmatpush.msra.mxu0 %v132
  %701 = vmatpush.msra.mxu0 %v130
  %702 = vmatpush.msra.mxu0 %v128
  %703 = vmatmul.f32.gmra.mxu0 %v665
  %v704 = vpop.f32.mrf.mxu0
  %v705 = vadd.f32 0.0, %v704
  %706 = vdwg.mxu0
  %v707 = vadd.f32 %v705, %v145
  %v708 = vtanh.pop %v707
  %v709 = vmul.f32 %v708, 0.5
  %v710 = vadd.f32 %v709, 0.5
  %v711 = vmul.f32 %v710, %v624
  %713 = vrot.lane.b32.xlu0 %v708, 64
  %v714 = vpop.permute.xlu0 %713
  %v716 = vmul.f32 %v710, %v714
  %718 = vrot.lane.b32.xlu0 %v716, 32
  %v719 = vpop.permute.xlu0 %718
  %v721 = vadd.f32 %v711, %v719
  %v722 = vtanh.pop %v721
  %724 = vrot.lane.b32.xlu0 %v722, 64
  %v725 = vpop.permute.xlu0 %724
  %v727 = vmul.f32 %v710, %v725
  %729 = vrot.lane.b32.xlu0 %v727, 64
  %v730 = vpop.permute.xlu0 %729
  %732 = vst.msk [vmem:[#allocation3] sm:$0xff] %vm246, %v730
  %v733 = vld [vmem:[%s123] sm:$0xff]
  %v734 = vadd.f32 %v733, %v685
  %v735 = vtanh.pop %v734
  %v736 = vmul.f32 %v735, 0.5
  %v737 = vadd.f32 %v736, 0.5
  %v738 = vmul.f32 %v737, %v651
  %740 = vrot.lane.b32.xlu0 %v735, 64
  %v741 = vpop.permute.xlu0 %740
  %v743 = vmul.f32 %v737, %v741
  %745 = vrot.lane.b32.xlu0 %v743, 32
  %v746 = vpop.permute.xlu0 %745
  %v748 = vadd.f32 %v738, %v746
  %v749 = vtanh.pop %v748
  %751 = vrot.lane.b32.xlu0 %v749, 64
  %v752 = vpop.permute.xlu0 %751
  %v754 = vmul.f32 %v737, %v752
  %756 = vrot.lane.b32.xlu0 %v754, 32
  %v757 = vpop.permute.xlu0 %756
  %759 = vst.msk [vmem:[#allocation3] sm:$0xff] %vm175, %v757
  %v760 = vld [vmem:[#allocation3] sm:$0xff]
  %v762 = vsel %vm147, %v760, 0
  %764 = vmatpush.msra.mxu0 0.0
  %765 = vmatpush.msra.mxu0 0.0
  %766 = vmatpush.msra.mxu0 0.0
  %767 = vmatpush.msra.mxu0 0.0
  %768 = vmatpush.msra.mxu0 0.0
  %769 = vmatpush.msra.mxu0 0.0
  %770 = vmatpush.msra.mxu0 0.0
  %771 = vmatpush.msra.mxu0 0.0
  %772 = vmatpush.msra.mxu0 %v141
  %773 = vmatpush.msra.mxu0 %v139
  %774 = vmatpush.msra.mxu0 %v137
  %775 = vmatpush.msra.mxu0 %v135
  %776 = vmatpush.msra.mxu0 %v133
  %777 = vmatpush.msra.mxu0 %v131
  %778 = vmatpush.msra.mxu0 %v129
  %779 = vmatpush.msra.mxu0 %v127
  %780 = vmatmul.f32.gmra.mxu0 %v762
  %v781 = vpop.f32.mrf.mxu0
  %v782 = vadd.f32 0.0, %v781
  %783 = vdwg.mxu0
  %784 = vmatpush.msra.mxu0 0.0
  %785 = vmatpush.msra.mxu0 0.0
  %786 = vmatpush.msra.mxu0 0.0
  %787 = vmatpush.msra.mxu0 0.0
  %788 = vmatpush.msra.mxu0 0.0
  %789 = vmatpush.msra.mxu0 0.0
  %790 = vmatpush.msra.mxu0 0.0
  %791 = vmatpush.msra.mxu0 0.0
  %792 = vmatpush.msra.mxu0 %v142
  %793 = vmatpush.msra.mxu0 %v140
  %794 = vmatpush.msra.mxu0 %v138
  %795 = vmatpush.msra.mxu0 %v136
  %796 = vmatpush.msra.mxu0 %v134
  %797 = vmatpush.msra.mxu0 %v132
  %798 = vmatpush.msra.mxu0 %v130
  %799 = vmatpush.msra.mxu0 %v128
  %800 = vmatmul.f32.gmra.mxu0 %v762
  %v801 = vpop.f32.mrf.mxu0
  %v802 = vadd.f32 0.0, %v801
  %803 = vdwg.mxu0
  %v804 = vadd.f32 %v802, %v145
  %v805 = vtanh.pop %v804
  %v806 = vmul.f32 %v805, 0.5
  %v807 = vadd.f32 %v806, 0.5
  %v808 = vmul.f32 %v807, %v721
  %810 = vrot.lane.b32.xlu0 %v805, 64
  %v811 = vpop.permute.xlu0 %810
  %v813 = vmul.f32 %v807, %v811
  %815 = vrot.lane.b32.xlu0 %v813, 32
  %v816 = vpop.permute.xlu0 %815
  %v818 = vadd.f32 %v808, %v816
  %v819 = vtanh.pop %v818
  %821 = vrot.lane.b32.xlu0 %v819, 64
  %v822 = vpop.permute.xlu0 %821
  %v824 = vmul.f32 %v807, %v822
  %826 = vrot.lane.b32.xlu0 %v824, 64
  %v827 = vpop.permute.xlu0 %826
  %829 = vst.msk [vmem:[#allocation3] sm:$0xff] %vm246, %v827
  %v830 = vld [vmem:[%s125] sm:$0xff]
  %v831 = vadd.f32 %v830, %v782
  %v832 = vtanh.pop %v831
  %v833 = vmul.f32 %v832, 0.5
  %v834 = vadd.f32 %v833, 0.5
  %v835 = vmul.f32 %v834, %v748
  %837 = vrot.lane.b32.xlu0 %v832, 64
  %v838 = vpop.permute.xlu0 %837
  %v840 = vmul.f32 %v834, %v838
  %842 = vrot.lane.b32.xlu0 %v840, 32
  %v843 = vpop.permute.xlu0 %842
  %v845 = vadd.f32 %v835, %v843
  %v846 = vtanh.pop %v845
  %848 = vrot.lane.b32.xlu0 %v846, 64
  %v849 = vpop.permute.xlu0 %848
  %v851 = vmul.f32 %v834, %v849
  %853 = vrot.lane.b32.xlu0 %v851, 32
  %v854 = vpop.permute.xlu0 %853
  %856 = vst.msk [vmem:[#allocation3] sm:$0xff] %vm175, %v854
  %v857 = vld [vmem:[#allocation3] sm:$0xff]
  %v859 = vsel %vm147, %v857, 0
  %861 = vmatpush.msra.mxu0 0.0
  %862 = vmatpush.msra.mxu0 0.0
  %863 = vmatpush.msra.mxu0 0.0
  %864 = vmatpush.msra.mxu0 0.0
  %865 = vmatpush.msra.mxu0 0.0
  %866 = vmatpush.msra.mxu0 0.0
  %867 = vmatpush.msra.mxu0 0.0
  %868 = vmatpush.msra.mxu0 0.0
  %869 = vmatpush.msra.mxu0 %v142
  %870 = vmatpush.msra.mxu0 %v140
  %871 = vmatpush.msra.mxu0 %v138
  %872 = vmatpush.msra.mxu0 %v136
  %873 = vmatpush.msra.mxu0 %v134
  %874 = vmatpush.msra.mxu0 %v132
  %875 = vmatpush.msra.mxu0 %v130
  %876 = vmatpush.msra.mxu0 %v128
  %877 = vmatmul.f32.gmra.mxu0 %v859
  %v878 = vpop.f32.mrf.mxu0
  %v879 = vadd.f32 0.0, %v878
  %880 = vdwg.mxu0
  %v881 = vadd.f32 %v879, %v145
  %v882 = vtanh.pop %v881
  %v883 = vmul.f32 %v882, 0.5
  %v884 = vadd.f32 %v883, 0.5
  %v885 = vmul.f32 %v884, %v818
  %887 = vrot.lane.b32.xlu0 %v882, 64
  %v888 = vpop.permute.xlu0 %887
  %v890 = vmul.f32 %v884, %v888
  %892 = vrot.lane.b32.xlu0 %v890, 32
  %v893 = vpop.permute.xlu0 %892
  %v895 = vadd.f32 %v885, %v893
  %v896 = vtanh.pop %v895
  %898 = vrot.lane.b32.xlu0 %v896, 64
  %v899 = vpop.permute.xlu0 %898
  %v901 = vmul.f32 %v884, %v899
  %903 = vrot.lane.b32.xlu0 %v901, 64
  %v904 = vpop.permute.xlu0 %903
  %906 = vst.msk [vmem:[#allocation3] sm:$0xff] %vm246, %v904
  %907 = vrot.lane.b32.xlu0 %v901, 32
  %v908 = vpop.permute.xlu0 %907
  %v910 = vsel %vm175, %v908, 0.0
  %911 = vadd.xlane.f32.xlu0 %v910
  %v912 = vpop.xlane.xlu0 %911
  %v913 = vrcp.pop 32.0
  %v914 = vmul.f32 32.0, %v913
  %v915 = vsub.f32 1.0, %v914
  %v916 = vmul.f32 %v913, %v915
  %v917 = vadd.f32 %v913, %v916
  %vm918 = vweird.f32 %v913
  %v919 = vsel %vm918, %v913, %v917
  %v920 = vmul.f32 %v912, %v919
  %v921 = vsub.f32 %v901, %v920
  %v922 = vmul.f32 %v921, %v921
  %924 = vrot.lane.b32.xlu0 %v922, 32
  %v925 = vpop.permute.xlu0 %924
  %v927 = vsel %vm175, %v925, 0.0
  %928 = vadd.xlane.f32.xlu0 %v927
  %v929 = vpop.xlane.xlu0 %928
  %v930 = vmul.f32 %v929, %v919
  %v931 = vadd.f32 %v930, 1e-05
  %v932 = vrsqrt.pop %v931
  %v933 = vmul.f32 %v932, %v931
  %v934 = vmul.f32 %v933, %v932
  %v935 = vmul.f32 0.5, %v934
  %v936 = vsub.f32 1.5, %v935
  %v937 = vmul.f32 %v932, %v936
  %vm938 = vweird.f32 %v931
  %vm939 = vweird.f32 %v932
  %vm940 = vmor %vm938, %vm939
  %v941 = vsel %vm940, %v932, %v937
  %v942 = vmul.f32 %v921, %v941
  %v943 = vld [vmem:[%s5] sm:$0xff]
  %v944 = vld [vmem:[%s5 + $0x8] sm:$0xff]
  %v945 = vld [vmem:[%s5 + $0x10] sm:$0xff]
  %v946 = vld [vmem:[%s5 + $0x18] sm:$0xff]
  %v947 = vld [vmem:[%s6] sm:$0x1]
  %v949 = vperm.slane %v947, 0
  %952 = vrot.lane.b32.xlu0 %v942, 32
  %v953 = vpop.permute.xlu0 %952
  %v954 = vsel %vm175, %v953, 0
  %956 = vmatpush.msra.mxu0 0.0
  %957 = vmatpush.msra.mxu0 0.0
  %958 = vmatpush.msra.mxu0 0.0
  %959 = vmatpush.msra.mxu0 0.0
  %960 = vmatpush.msra.mxu0 0.0
  %961 = vmatpush.msra.mxu0 0.0
  %962 = vmatpush.msra.mxu0 0.0
  %963 = vmatpush.msra.mxu0 0.0
  %964 = vmatpush.msra.mxu0 0.0
  %965 = vmatpush.msra.mxu0 0.0
  %966 = vmatpush.msra.mxu0 0.0
  %967 = vmatpush.msra.mxu0 0.0
  %968 = vmatpush.msra.mxu0 %v946
  %969 = vmatpush.msra.mxu0 %v945
  %970 = vmatpush.msra.mxu0 %v944
  %971 = vmatpush.msra.mxu0 %v943
  %972 = vmatmul.f32.gmra.mxu0 %v954
  %v973 = vpop.f32.mrf.mxu0
  %v974 = vadd.f32 %v949, %v973
  %975 = vdwg.mxu0
  %v976 = vmax.f32 %v974, 0.0
  %v977 = vld [vmem:[%s7] sm:$0xff]
  %v978 = vld [vmem:[%s7 + $0x8] sm:$0xff]
  %v979 = vld [vmem:[%s7 + $0x10] sm:$0xff]
  %v980 = vld [vmem:[%s7 + $0x18] sm:$0xff]
  %v981 = vld [vmem:[%s7 + $0x20] sm:$0xff]
  %v982 = vld [vmem:[%s7 + $0x28] sm:$0xff]
  %v983 = vld [vmem:[%s7 + $0x30] sm:$0xff]
  %v984 = vld [vmem:[%s7 + $0x38] sm:$0xff]
  %v985 = vld [vmem:[%s7 + $0x40] sm:$0xff]
  %v986 = vld [vmem:[%s7 + $0x48] sm:$0xff]
  %v987 = vld [vmem:[%s7 + $0x50] sm:$0xff]
  %v988 = vld [vmem:[%s7 + $0x58] sm:$0xff]
  %v989 = vld [vmem:[%s7 + $0x60] sm:$0xff]
  %v990 = vld [vmem:[%s7 + $0x68] sm:$0xff]
  %v991 = vld [vmem:[%s7 + $0x70] sm:$0xff]
  %v992 = vld [vmem:[%s7 + $0x78] sm:$0xff]
  %v993 = vld [vmem:[%s8] sm:$0x1]
  %v995 = vperm.slane %v993, 0
  %997 = vmatpush.msra.mxu0 %v992
  %998 = vmatpush.msra.mxu0 %v991
  %999 = vmatpush.msra.mxu0 %v990
  %1000 = vmatpush.msra.mxu0 %v989
  %1001 = vmatpush.msra.mxu0 %v988
  %1002 = vmatpush.msra.mxu0 %v987
  %1003 = vmatpush.msra.mxu0 %v986
  %1004 = vmatpush.msra.mxu0 %v985
  %1005 = vmatpush.msra.mxu0 %v984
  %1006 = vmatpush.msra.mxu0 %v983
  %1007 = vmatpush.msra.mxu0 %v982
  %1008 = vmatpush.msra.mxu0 %v981
  %1009 = vmatpush.msra.mxu0 %v980
  %1010 = vmatpush.msra.mxu0 %v979
  %1011 = vmatpush.msra.mxu0 %v978
  %1012 = vmatpush.msra.mxu0 %v977
  %1013 = vmatmul.f32.gmra.mxu0 %v976
  %v1014 = vpop.f32.mrf.mxu0
  %v1015 = vadd.f32 %v995, %v1014
  %1016 = vdwg.mxu0
  %vm1017 = vcmask 31744
  %1018 = vst.msk [vmem:[%s9] sm:$0xff] %vm1017, %v1015
  // Predicated region
  $region38: #{tpu_custom_call.1} parent=0 // pred_check
    _
  $region39: #{tpu_custom_call.1} parent=0 // pred_check_branch
    %1020 = sbr.rel (0) target = $region41
  $region40: #{tpu_custom_call.1} parent=0 // pred_region
    _
  $region41: #{tpu_custom_call.1} parent=0 // pred_fallthru
    _
  // Predicated region
  $region42: #{tpu_custom_call.1} parent=0 // pred_check
    _
  $region43: #{tpu_custom_call.1} parent=0 // pred_check_branch
    %1022 = sbr.rel (0) target = $region45
  $region44: #{tpu_custom_call.1} parent=0 // pred_region
    _
  $region45: #{tpu_custom_call.1} parent=0 // pred_fallthru
    _

</llo_original>
